<compile_context>
chip_gen: v7x
topology: tpu7x:2x2x1
jax: 0.10.0
libtpu: 0.0.40
codegen_flags: <defaults>
</compile_context>

<pallas_src>
import functools

import jax
import jax.numpy as jnp
from jax.experimental import pallas as pl
from jax.experimental.pallas import tpu as pltpu


_ROW_TILE = 512            # fallback row tile; N zero-padded to a multiple
_LANE = 128                # latent dim padded to a lane-dense multiple of 128


def _round_up(x, m):
    return (x + m - 1) // m * m


def _tpu_vmem_capacity():
    try:
        return int(pltpu.get_tpu_info().vmem_capacity_bytes)
    except Exception:
        return 64 * 2**20          # conservative default (v7x per-TC VMEM)


# ----------------------------------------------------------------------------
# Fused kernel: all propagation layers + running-sum mean in ONE pallas_call.
#   grid = (n_layers,).  The bf16 adjacency and f32 emb0 are constant-index
#   inputs -> DMA'd from HBM exactly once for the whole forward.  The layer
#   embeddings ping-pong through a (2, N, D) bf16 scratch; the mean is a
#   running f32 sum, written to the (constant-index) final output only on
#   the last layer.
# ----------------------------------------------------------------------------
def _fused_lgcn_kernel(adj_ref, e0_ref, layers_ref, final_ref,
                       buf_ref, sum_ref, *, n_layers, inv_lp1):
    l = pl.program_id(0)

    @pl.when(l == 0)
    def _():
        e0 = e0_ref[...]
        buf_ref[0] = e0.astype(buf_ref.dtype)
        sum_ref[...] = e0

    rd = l & 1          # ping-pong read slot
    wr = 1 - rd         # ping-pong write slot

    # Full (N_pad, N_pad) x (N_pad, D_pad) bf16 matmul, f32 accumulate.
    new = jnp.dot(adj_ref[...], buf_ref[rd],
                  preferred_element_type=jnp.float32)

    buf_ref[wr] = new.astype(buf_ref.dtype)         # next layer's input
    layers_ref[0] = new.astype(layers_ref.dtype)    # emit emb_{l+1}
    sum_ref[...] = sum_ref[...] + new                # running sum

    # Only the last layer produces the mean; constant-index output block =>
    # a single HBM writeback at the end of the grid.
    @pl.when(l == n_layers - 1)
    def _():
        final_ref[...] = (sum_ref[...] * inv_lp1).astype(final_ref.dtype)


def _fused_vmem_bytes(n_pad, d_pad):
    bf2, f4 = 2, 4
    return (2 * n_pad * n_pad * bf2        # adjacency (counted double-buffered)
            + 2 * n_pad * d_pad * f4       # emb0
            + 2 * n_pad * d_pad * f4       # per-layer output block
            + 2 * n_pad * d_pad * f4       # final output block
            + 2 * n_pad * d_pad * bf2      # ping-pong layer buffer
            + n_pad * d_pad * f4           # running sum
            + 4 * n_pad * d_pad * f4       # in-kernel temporaries slack
            + (2 << 20))                   # Mosaic internal scratch


def lgcn_propagate_fused(adj_bf, emb0, *, n_layers, vmem_limit):
    n_pad, d_pad = emb0.shape
    kernel = functools.partial(_fused_lgcn_kernel, n_layers=n_layers,
                               inv_lp1=1.0 / (n_layers + 1))
    layers, final = pl.pallas_call(
        kernel,
        out_shape=(
            jax.ShapeDtypeStruct((n_layers, n_pad, d_pad), jnp.float32),
            jax.ShapeDtypeStruct((n_pad, d_pad), jnp.float32),
        ),
        grid_spec=pltpu.PrefetchScalarGridSpec(
            num_scalar_prefetch=0,
            grid=(n_layers,),
            in_specs=[
                # adjacency: constant index map -> single DMA for all layers
                pl.BlockSpec((n_pad, n_pad), lambda l: (0, 0)),
                # emb0: constant index map -> single DMA
                pl.BlockSpec((n_pad, d_pad), lambda l: (0, 0)),
            ],
            out_specs=(
                pl.BlockSpec((1, n_pad, d_pad), lambda l: (l, 0, 0)),
                # constant index map -> written back to HBM once, at the end
                pl.BlockSpec((n_pad, d_pad), lambda l: (0, 0)),
            ),
            scratch_shapes=[
                pltpu.VMEM((2, n_pad, d_pad), jnp.bfloat16),  # ping-pong emb
                pltpu.VMEM((n_pad, d_pad), jnp.float32),      # running sum
            ],
        ),
        compiler_params=pltpu.CompilerParams(
            # layer axis is a true sequential dependency
            dimension_semantics=("arbitrary",),
            vmem_limit_bytes=vmem_limit,
        ),
    )(adj_bf, emb0)
    return layers, final


# ----------------------------------------------------------------------------
# Fallback (large N): one layer = k-tiled matmul with the running sum folded
# into the epilogue.  Row axis "parallel" (megacore on v7x), k axis
# "arbitrary".  Two variants: embedding fully VMEM-resident (sliced with
# pl.ds in-kernel) or streamed per k-tile.
# ----------------------------------------------------------------------------
def _prop_resident_kernel(a_ref, e_ref, s_ref, o_ref, so_ref, acc_ref, *, tk):
    j = pl.program_id(1)

    @pl.when(j == 0)
    def _():
        acc_ref[...] = jnp.zeros_like(acc_ref)

    off = pl.multiple_of(j * tk, tk)
    acc_ref[...] += jnp.dot(a_ref[...], e_ref[pl.ds(off, tk), :],
                            preferred_element_type=jnp.float32)

    @pl.when(j == pl.num_programs(1) - 1)
    def _():
        res = acc_ref[...]
        o_ref[...] = res.astype(o_ref.dtype)
        so_ref[...] = s_ref[...] + res        # fused layer running-sum


def _prop_streamed_kernel(a_ref, e_ref, s_ref, o_ref, so_ref, acc_ref):
    j = pl.program_id(1)

    @pl.when(j == 0)
    def _():
        acc_ref[...] = jnp.zeros_like(acc_ref)

    acc_ref[...] += jnp.dot(a_ref[...], e_ref[...],
                            preferred_element_type=jnp.float32)

    @pl.when(j == pl.num_programs(1) - 1)
    def _():
        res = acc_ref[...]
        o_ref[...] = res.astype(o_ref.dtype)
        so_ref[...] = s_ref[...] + res


def _tiled_vmem_bytes(tm, tk, n_pad, d_pad, emb_resident):
    bf2, f4 = 2, 4
    emb_rows = n_pad if emb_resident else tk
    return (2 * tm * tk * bf2              # adj tiles (double-buffered)
            + 2 * emb_rows * d_pad * bf2   # embedding operand
            + 2 * tm * d_pad * f4          # sum_in blocks
            + 4 * tm * d_pad * f4          # out + sum_out blocks
            + tm * d_pad * f4              # f32 accumulator scratch
            + 4 * tm * d_pad * f4          # epilogue temporaries slack
            + (2 << 20))                   # Mosaic internal scratch


def propagate_layer(adj_bf, e_bf, run_sum, *, tm, tk, emb_resident,
                    vmem_limit):
    n_pad = adj_bf.shape[0]
    d_pad = e_bf.shape[1]
    if emb_resident:
        kernel = functools.partial(_prop_resident_kernel, tk=tk)
        e_spec = pl.BlockSpec((n_pad, d_pad), lambda i, j: (0, 0))
    else:
        kernel = _prop_streamed_kernel
        e_spec = pl.BlockSpec((tk, d_pad), lambda i, j: (j, 0))
    out, new_sum = pl.pallas_call(
        kernel,
        out_shape=(
            jax.ShapeDtypeStruct((n_pad, d_pad), jnp.float32),
            jax.ShapeDtypeStruct((n_pad, d_pad), jnp.float32),
        ),
        grid_spec=pltpu.PrefetchScalarGridSpec(
            num_scalar_prefetch=0,
            grid=(n_pad // tm, n_pad // tk),
            in_specs=[
                pl.BlockSpec((tm, tk), lambda i, j: (i, j)),
                e_spec,
                pl.BlockSpec((tm, d_pad), lambda i, j: (i, 0)),
            ],
            out_specs=(
                pl.BlockSpec((tm, d_pad), lambda i, j: (i, 0)),
                pl.BlockSpec((tm, d_pad), lambda i, j: (i, 0)),
            ),
            scratch_shapes=[pltpu.VMEM((tm, d_pad), jnp.float32)],
        ),
        compiler_params=pltpu.CompilerParams(
            dimension_semantics=("parallel", "arbitrary"),
            vmem_limit_bytes=vmem_limit,
        ),
    )(adj_bf, e_bf, run_sum)
    return out, new_sum


# ----------------------------------------------------------------------------
# LGCNEncoder forward (padding / path selection in plain JAX)
# ----------------------------------------------------------------------------
@functools.partial(jax.jit, static_argnames=("n_layers", "user_num", "mode"))
def lgcn_forward(user_emb, item_emb, norm_adj, *, n_layers, user_num,
                 mode="auto"):
    # TODO(synk): the PyTorch module uses torch.sparse.mm with a sparse
    # norm_adj; here the adjacency is dense (bf16).  A block-sparse variant
    # (scalar-prefetched nonzero tile maps driving a data-dependent
    # index_map) would cut HBM/MXU work by ~1/density and is left as a
    # follow-up.
    emb0 = jnp.concatenate([user_emb, item_emb], axis=0).astype(jnp.float32)
    n, d = emb0.shape
    if n_layers == 0:
        return emb0[:user_num], emb0[user_num:], [emb0]

    n_pad = _round_up(n, _ROW_TILE)
    d_pad = _round_up(d, _LANE)
    emb0_p = jnp.pad(emb0, ((0, n_pad - n), (0, d_pad - d)))
    adj_bf = jnp.pad(norm_adj.astype(jnp.float32),
                     ((0, n_pad - n), (0, n_pad - n))).astype(jnp.bfloat16)

    cap = _tpu_vmem_capacity()
    budget = int(0.7 * cap)

    use_fused = (mode == "auto") and (_fused_vmem_bytes(n_pad, d_pad) <= budget)
    # NOTE: on v7x (2 TensorCores) the tiled path's row-parallel grid can use
    # both cores while the fused path runs on one; for mid-size N where both
    # fit, the fused path still wins on HBM bytes (adjacency read once).

    if use_fused:
        need = _fused_vmem_bytes(n_pad, d_pad)
        vmem_limit = int(min(max(need + (8 << 20), 32 << 20), int(0.9 * cap)))
        layers_p, final_p = lgcn_propagate_fused(
            adj_bf, emb0_p, n_layers=n_layers, vmem_limit=vmem_limit)
        all_emb = [emb0] + [layers_p[l, :n, :d] for l in range(n_layers)]
        final = final_p[:n, :d]
    else:
        tm = _ROW_TILE
        tk = 2048 if n_pad % 2048 == 0 else (1024 if n_pad % 1024 == 0 else 512)
        emb_resident = (mode != "tiled_stream") and (
            _tiled_vmem_bytes(tm, tk, n_pad, d_pad, True) <= budget)
        need = _tiled_vmem_bytes(tm, tk, n_pad, d_pad, emb_resident)
        vmem_limit = int(min(max(need + (8 << 20), 32 << 20), int(0.9 * cap)))

        e_bf = emb0_p.astype(jnp.bfloat16)
        running = emb0_p
        all_emb_p = [emb0_p]
        for _ in range(n_layers):
            out, running = propagate_layer(
                adj_bf, e_bf, running, tm=tm, tk=tk,
                emb_resident=emb_resident, vmem_limit=vmem_limit)
            all_emb_p.append(out)
            e_bf = out.astype(jnp.bfloat16)
        final = (running * (1.0 / (n_layers + 1)))[:n, :d]
        all_emb = [emb0] + [a[:n, :d] for a in all_emb_p[1:]]

    return final[:user_num], final[user_num:], all_emb


# ----------------------------------------------------------------------------
# Deterministic synthetic setup (embeddings + normalized adjacency)
# ----------------------------------------------------------------------------
def xavier_uniform(key, shape, dtype=jnp.float32):
    fan_in, fan_out = shape[0], shape[1]
    bound = jnp.sqrt(6.0 / (fan_in + fan_out))
    return jax.random.uniform(key, shape, dtype, minval=-bound, maxval=bound)


def build_norm_adj(key, user_num, item_num, density=0.1):
    """Symmetric-normalized bipartite adjacency D^{-1/2} A D^{-1/2}, dense."""
    n = user_num + item_num
    r = (jax.random.uniform(key, (user_num, item_num)) < density).astype(
        jnp.float32)
    adj = jnp.zeros((n, n), jnp.float32)
    adj = adj.at[:user_num, user_num:].set(r)
    adj = adj.at[user_num:, :user_num].set(r.T)
    deg = jnp.sum(adj, axis=1)
    d_inv_sqrt = jnp.where(deg > 0, 1.0 / jnp.sqrt(jnp.maximum(deg, 1e-12)),
                           0.0)
    return adj * d_inv_sqrt[:, None] * d_inv_sqrt[None, :]


if __name__ == "__main__":
    user_num, item_num = 96, 160          # N = 256
    emb_size = 64                         # latent_size D (padded to 128 lanes)
    n_layers = 3

    key = jax.random.PRNGKey(0)
    k_u, k_i, k_adj = jax.random.split(key, 3)

    user_emb = xavier_uniform(k_u, (user_num, emb_size))
    item_emb = xavier_uniform(k_i, (item_num, emb_size))
    norm_adj = build_norm_adj(k_adj, user_num, item_num)

    # reference in plain JAX (f32)
    emb = jnp.concatenate([user_emb, item_emb], axis=0)
    ref_all = [emb]
    for _ in range(n_layers):
        emb = norm_adj @ emb
        ref_all.append(emb)
    ref_final = jnp.mean(jnp.stack(ref_all, 0), axis=0)

    # exercise the fused path plus both fallback variants
    for mode in ("auto", "tiled", "tiled_stream"):
        u_out, i_out, all_emb = lgcn_forward(
            user_emb, item_emb, norm_adj,
            n_layers=n_layers, user_num=user_num, mode=mode)
        jax.block_until_ready((u_out, i_out, all_emb))

        assert u_out.shape == (user_num, emb_size)
        assert i_out.shape == (item_num, emb_size)
        assert len(all_emb) == n_layers + 1
        # bf16 adjacency / bf16 MXU operands with f32 accumulation
        assert jnp.allclose(u_out, ref_final[:user_num], atol=5e-3, rtol=0)
        assert jnp.allclose(i_out, ref_final[user_num:], atol=5e-3, rtol=0)
        assert jnp.allclose(all_emb[0], ref_all[0], atol=1e-6, rtol=0)
        for a, b in zip(all_emb[1:], ref_all[1:]):
            assert jnp.allclose(a, b, atol=5e-3, rtol=0)

    print("KERNEL_OK")
</pallas_src>

<mosaic_0001>
module attributes {stable_mosaic.version = 11 : i64} {
  func.func @_fused_lgcn_kernel(%arg0: i32, %arg1: memref<512x512xbf16, #tpu.memory_space<vmem>>, %arg2: memref<512x128xf32, #tpu.memory_space<vmem>>, %arg3: memref<1x512x128xf32, #tpu.memory_space<vmem>>, %arg4: memref<512x128xf32, #tpu.memory_space<vmem>>, %arg5: memref<2x512x128xbf16, #tpu.memory_space<vmem>>, %arg6: memref<512x128xf32, #tpu.memory_space<vmem>>) attributes {dimension_semantics = [#tpu.dimension_semantics<arbitrary>], iteration_bounds = array<i64: 3>, scalar_prefetch = 0 : i64, scratch_operands = 2 : i64, tpu.core_type = #tpu.core_type<tc>, window_params = [{pipeline_mode = #tpu.pipeline_mode<synchronous>, transform_indices = @transform_0, window_bounds = array<i64: 512, 512>}, {pipeline_mode = #tpu.pipeline_mode<synchronous>, transform_indices = @transform_1, window_bounds = array<i64: 512, 128>}, {transform_indices = @transform_2, window_bounds = array<i64: 1, 512, 128>}, {pipeline_mode = #tpu.pipeline_mode<synchronous>, transform_indices = @transform_3, window_bounds = array<i64: 512, 128>}]} {
    %c0_i32 = arith.constant 0 : i32
    %0 = arith.cmpi eq, %arg0, %c0_i32 : i32
    %1 = arith.extui %0 : i1 to i32
    %c0_i32_0 = arith.constant 0 : i32
    %2 = arith.cmpi ne, %1, %c0_i32_0 : i32
    scf.if %2 {
      %c0_15 = arith.constant 0 : index
      %c0_16 = arith.constant 0 : index
      %24 = vector.load %arg2[%c0_15, %c0_16] : memref<512x128xf32, #tpu.memory_space<vmem>>, vector<512x128xf32>
      %25 = arith.truncf %24 : vector<512x128xf32> to vector<512x128xbf16>
      %c0_17 = arith.constant 0 : index
      %c0_18 = arith.constant 0 : index
      %c0_19 = arith.constant 0 : index
      %26 = vector.load %arg5[%c0_17, %c0_18, %c0_19] : memref<2x512x128xbf16, #tpu.memory_space<vmem>>, vector<1x512x128xbf16>
      %27 = vector.shape_cast %26 : vector<1x512x128xbf16> to vector<512x128xbf16>
      %28 = vector.shape_cast %25 : vector<512x128xbf16> to vector<1x512x128xbf16>
      tpu.vector_store %arg5[%c0_17, %c0_18, %c0_19], %28 {strides = array<i32>} : memref<2x512x128xbf16, #tpu.memory_space<vmem>>, vector<1x512x128xbf16>,
      %c0_20 = arith.constant 0 : index
      %c0_21 = arith.constant 0 : index
      %29 = vector.load %arg6[%c0_20, %c0_21] : memref<512x128xf32, #tpu.memory_space<vmem>>, vector<512x128xf32>
      tpu.vector_store %arg6[%c0_20, %c0_21], %24 {strides = array<i32>} : memref<512x128xf32, #tpu.memory_space<vmem>>, vector<512x128xf32>,
    } else {
    }
    %c1_i32 = arith.constant 1 : i32
    %3 = arith.andi %arg0, %c1_i32 : i32
    %c1_i32_1 = arith.constant 1 : i32
    %4 = arith.subi %c1_i32_1, %3 : i32
    %c0 = arith.constant 0 : index
    %c0_2 = arith.constant 0 : index
    %5 = vector.load %arg1[%c0, %c0_2] : memref<512x512xbf16, #tpu.memory_space<vmem>>, vector<512x512xbf16>
    %6 = arith.index_cast %3 : i32 to index
    %c0_3 = arith.constant 0 : index
    %c0_4 = arith.constant 0 : index
    %7 = vector.load %arg5[%6, %c0_3, %c0_4] : memref<2x512x128xbf16, #tpu.memory_space<vmem>>, vector<1x512x128xbf16>
    %8 = vector.shape_cast %7 : vector<1x512x128xbf16> to vector<512x128xbf16>
    %cst = arith.constant dense<0.000000e+00> : vector<512x128xf32>
    %9 = tpu.matmul %5, %8, %cst {dimension_numbers = #tpu.dot_dimension_numbers<[1], [0], [0], [1], [0, 0, 1, 1], [], []>} : vector<512x512xbf16>, vector<512x128xbf16>, vector<512x128xf32> -> vector<512x128xf32>
    %10 = arith.truncf %9 : vector<512x128xf32> to vector<512x128xbf16>
    %11 = arith.index_cast %4 : i32 to index
    %c0_5 = arith.constant 0 : index
    %c0_6 = arith.constant 0 : index
    %12 = vector.load %arg5[%11, %c0_5, %c0_6] : memref<2x512x128xbf16, #tpu.memory_space<vmem>>, vector<1x512x128xbf16>
    %13 = vector.shape_cast %12 : vector<1x512x128xbf16> to vector<512x128xbf16>
    %14 = vector.shape_cast %10 : vector<512x128xbf16> to vector<1x512x128xbf16>
    tpu.vector_store %arg5[%11, %c0_5, %c0_6], %14 {strides = array<i32>} : memref<2x512x128xbf16, #tpu.memory_space<vmem>>, vector<1x512x128xbf16>,
    %c0_7 = arith.constant 0 : index
    %c0_8 = arith.constant 0 : index
    %c0_9 = arith.constant 0 : index
    %15 = vector.load %arg3[%c0_7, %c0_8, %c0_9] : memref<1x512x128xf32, #tpu.memory_space<vmem>>, vector<1x512x128xf32>
    %16 = vector.shape_cast %15 : vector<1x512x128xf32> to vector<512x128xf32>
    %17 = vector.shape_cast %9 : vector<512x128xf32> to vector<1x512x128xf32>
    tpu.vector_store %arg3[%c0_7, %c0_8, %c0_9], %17 {strides = array<i32>} : memref<1x512x128xf32, #tpu.memory_space<vmem>>, vector<1x512x128xf32>,
    %c0_10 = arith.constant 0 : index
    %c0_11 = arith.constant 0 : index
    %18 = vector.load %arg6[%c0_10, %c0_11] : memref<512x128xf32, #tpu.memory_space<vmem>>, vector<512x128xf32>
    %19 = arith.addf %18, %9 : vector<512x128xf32>
    %c0_12 = arith.constant 0 : index
    %c0_13 = arith.constant 0 : index
    %20 = vector.load %arg6[%c0_12, %c0_13] : memref<512x128xf32, #tpu.memory_space<vmem>>, vector<512x128xf32>
    tpu.vector_store %arg6[%c0_12, %c0_13], %19 {strides = array<i32>} : memref<512x128xf32, #tpu.memory_space<vmem>>, vector<512x128xf32>,
    %c2_i32 = arith.constant 2 : i32
    %21 = arith.cmpi eq, %arg0, %c2_i32 : i32
    %22 = arith.extui %21 : i1 to i32
    %c0_i32_14 = arith.constant 0 : i32
    %23 = arith.cmpi ne, %22, %c0_i32_14 : i32
    scf.if %23 {
      %c0_15 = arith.constant 0 : index
      %c0_16 = arith.constant 0 : index
      %24 = vector.load %arg6[%c0_15, %c0_16] : memref<512x128xf32, #tpu.memory_space<vmem>>, vector<512x128xf32>
      %cst_17 = arith.constant 2.500000e-01 : f32
      %25 = vector.broadcast %cst_17 : f32 to vector<512x128xf32>
      %26 = arith.mulf %24, %25 : vector<512x128xf32>
      %c0_18 = arith.constant 0 : index
      %c0_19 = arith.constant 0 : index
      %27 = vector.load %arg4[%c0_18, %c0_19] : memref<512x128xf32, #tpu.memory_space<vmem>>, vector<512x128xf32>
      tpu.vector_store %arg4[%c0_18, %c0_19], %26 {strides = array<i32>} : memref<512x128xf32, #tpu.memory_space<vmem>>, vector<512x128xf32>,
    } else {
    }
    return
  }
  func.func @transform_0(%arg0: i32) -> (i32, i32) {
    %c0_i32 = arith.constant 0 : i32
    %c0_i32_0 = arith.constant 0 : i32
    %c0_i32_1 = arith.constant 0 : i32
    return %c0_i32, %c0_i32_0 : i32, i32
  }
  func.func @transform_1(%arg0: i32) -> (i32, i32) {
    %c0_i32 = arith.constant 0 : i32
    %c0_i32_0 = arith.constant 0 : i32
    %c0_i32_1 = arith.constant 0 : i32
    return %c0_i32, %c0_i32_0 : i32, i32
  }
  func.func @transform_2(%arg0: i32) -> (i32, i32, i32) {
    %c0_i32 = arith.constant 0 : i32
    %c0_i32_0 = arith.constant 0 : i32
    %c0_i32_1 = arith.constant 0 : i32
    return %arg0, %c0_i32, %c0_i32_0 : i32, i32, i32
  }
  func.func @transform_3(%arg0: i32) -> (i32, i32) {
    %c0_i32 = arith.constant 0 : i32
    %c0_i32_0 = arith.constant 0 : i32
    %c0_i32_1 = arith.constant 0 : i32
    return %c0_i32, %c0_i32_0 : i32, i32
  }
}

</mosaic_0001>

<llo_original>
// kernel: lgcn_forward.1
$region0: #{lgcn_forward.1}
  #allocation0 [shape = 'u32[]', space=smem, size = 0x4, offset = 0x4, fixed_abs, tag = 'smem constant byte address 0x4 - core index']
  #allocation1 [shape = 'u32[144,128]{1,0:T(1,128)}', space=vmem, size = 0x12000, scoped, tag = 'internal scratch']
  #allocation2 [shape = 'bf16[2,512,128]{2,1,0:T(16,128)(2,1)}', space=vmem, size = 0x40000, scoped, tag = 'scratch operand']
  #allocation3 [shape = 'f32[512,128]{1,0:T(8,128)}', space=vmem, size = 0x40000, scoped, tag = 'scratch operand']
  %s0 = inlined_call_operand.vmem [shape: bf16[512,512], index: 0, kind: input, shape index: {}]
  %s1 = inlined_call_operand.vmem [shape: f32[512,128], index: 1, kind: input, shape index: {}]
  %s2 = inlined_call_operand.vmem [shape: f32[3,512,128], index: 2, kind: output, shape index: {0}]
  %s3 = inlined_call_operand.vmem [shape: f32[512,128], index: 3, kind: output, shape index: {1}]
  %4 = xla_tuple %s2, %s3
  %s5 = sld [smem:[#allocation0]]
  $region57: #{lgcn_forward.1} parent=0
    _
  %s7 = ssub.s32 1, %s5
  %s8 = scalar_select 0, %s7, %s5
  loop: start=0, step=1, limit=5
  $region2: #{lgcn_forward.1} parent=0 // loop_pre_header
    _
  $region3: #{lgcn_forward.1} parent=0 // loop_header
    %s10 = sphi 0, %s14
    %p11 = scmp.ge.s32.totalorder %s10, 5
    %s18 = sphi 0, %s18
    %s20 = sphi 0, %s18
    %s21 = sphi 0, %s20
    %s35 = sphi 0, %s21
    %s39 = sphi 0, %s39
    %s41 = sphi 0, %s39
    %s42 = sphi 0, %s41
    %s56 = sphi 0, %s42
    %s62 = sphi 0, %s64
    %s65 = sphi 0, %s62
    %s66 = sphi 0, %s65
    %s82 = sphi 0, %s66
    %s86 = sphi 0, %s86
    %s88 = sphi 0, %s86
    %s89 = sphi 0, %s88
    %s103 = sphi 0, %s89
  $region4: #{lgcn_forward.1} parent=0 // loop_header_branch
    %13 = sbr.rel (%p11) target = $region8
  $region5: #{lgcn_forward.1} parent=0 // loop_body
    %s15 = ssub.s32 %s10, 1
    %s16 = ssub.s32 %s10, 2
    %s17 = sadd.s32 %s10, 1
    %s19 = sadd.s32 %s18, 1
    %p22 = scmp.eq.s32.totalorder %s10, 2
    %p23 = scmp.ne.s32.totalorder %s18, %s20
    %p24 = scmp.eq.s32.totalorder %s10, 0
    %p25 = por %p23, %p24
    %p26 = scmp.ne.s32.totalorder %s18, %s20
    %p27 = scmp.eq.s32.totalorder %s15, 2
    %p28 = por %p26, %p27
    %p29 = scmp.ne.s32.totalorder %s20, %s21
    %p30 = scmp.eq.s32.totalorder %s15, 0
    %p31 = por %p29, %p30
    %p32 = scmp.ne.s32.totalorder %s20, %s21
    %p33 = scmp.eq.s32.totalorder %s16, 2
    %p34 = por %p32, %p33
    %p36 = scmp.ne.s32.totalorder %s21, %s35
    %p37 = scmp.eq.s32.totalorder %s16, 0
    %p38 = por %p36, %p37
    %s40 = sadd.s32 %s39, 1
    %p43 = scmp.eq.s32.totalorder %s10, 2
    %p44 = scmp.ne.s32.totalorder %s39, %s41
    %p45 = scmp.eq.s32.totalorder %s10, 0
    %p46 = por %p44, %p45
    %p47 = scmp.ne.s32.totalorder %s39, %s41
    %p48 = scmp.eq.s32.totalorder %s15, 2
    %p49 = por %p47, %p48
    %p50 = scmp.ne.s32.totalorder %s41, %s42
    %p51 = scmp.eq.s32.totalorder %s15, 0
    %p52 = por %p50, %p51
    %p53 = scmp.ne.s32.totalorder %s41, %s42
    %p54 = scmp.eq.s32.totalorder %s16, 2
    %p55 = por %p53, %p54
    %p57 = scmp.ne.s32.totalorder %s42, %s56
    %p58 = scmp.eq.s32.totalorder %s16, 0
    %p59 = por %p57, %p58
    %s60 = ssub.s32 %s10, %s17
    %p61 = scmp.eq.s32.totalorder %s60, 0
    %s63 = sadd.s32 %s62, 1
    %s64 = scalar_select %p61, %s62, %s63
    %p67 = pneg %p61
    %p68 = scmp.eq.s32.totalorder %s10, 2
    %p69 = por %p67, %p68
    %p70 = scmp.ne.s32.totalorder %s62, %s65
    %p71 = scmp.eq.s32.totalorder %s10, 0
    %p72 = por %p70, %p71
    %p73 = scmp.ne.s32.totalorder %s62, %s65
    %p74 = scmp.eq.s32.totalorder %s15, 2
    %p75 = por %p73, %p74
    %p76 = scmp.ne.s32.totalorder %s65, %s66
    %p77 = scmp.eq.s32.totalorder %s15, 0
    %p78 = por %p76, %p77
    %p79 = scmp.ne.s32.totalorder %s65, %s66
    %p80 = scmp.eq.s32.totalorder %s16, 2
    %p81 = por %p79, %p80
    %p83 = scmp.ne.s32.totalorder %s66, %s82
    %p84 = scmp.eq.s32.totalorder %s16, 0
    %p85 = por %p83, %p84
    %s87 = sadd.s32 %s86, 1
    %p90 = scmp.eq.s32.totalorder %s10, 2
    %p91 = scmp.ne.s32.totalorder %s86, %s88
    %p92 = scmp.eq.s32.totalorder %s10, 0
    %p93 = por %p91, %p92
    %p94 = scmp.ne.s32.totalorder %s86, %s88
    %p95 = scmp.eq.s32.totalorder %s15, 2
    %p96 = por %p94, %p95
    %p97 = scmp.ne.s32.totalorder %s88, %s89
    %p98 = scmp.eq.s32.totalorder %s15, 0
    %p99 = por %p97, %p98
    %p100 = scmp.ne.s32.totalorder %s88, %s89
    %p101 = scmp.eq.s32.totalorder %s16, 2
    %p102 = por %p100, %p101
    %p104 = scmp.ne.s32.totalorder %s89, %s103
    %p105 = scmp.eq.s32.totalorder %s16, 0
    %p106 = por %p104, %p105
    %p107 = scmp.le.s32.totalorder 1, %s10
    %p108 = scmp.lt.s32.totalorder %s10, 4
    %p109 = pnand %p107, %p108
    %p110 = pneg %p109
    // Predicated region
    $region9: #{lgcn_forward.1} parent=5 // pred_check
      _
    $region10: #{lgcn_forward.1} parent=5 // pred_check_branch
      %112 = sbr.rel (%p109) target = $region12
    $region11: #{lgcn_forward.1} parent=5 // pred_region
      %s113 = ssub.s32 %s10, 1
      // Predicated region
      $region13: #{lgcn_forward.1} parent=11 // pred_check
        %p114 = pneg %p31
      $region14: #{lgcn_forward.1} parent=11 // pred_check_branch
        %116 = sbr.rel (%p114) target = $region16
      $region15: #{lgcn_forward.1} parent=11 // pred_region
        _
      $region16: #{lgcn_forward.1} parent=11 // pred_fallthru
        _
      // Predicated region
      $region17: #{lgcn_forward.1} parent=11 // pred_check
        %p117 = pneg %p52
      $region18: #{lgcn_forward.1} parent=11 // pred_check_branch
        %119 = sbr.rel (%p117) target = $region20
      $region19: #{lgcn_forward.1} parent=11 // pred_region
        _
      $region20: #{lgcn_forward.1} parent=11 // pred_fallthru
        _
    $region12: #{lgcn_forward.1} parent=5 // pred_fallthru
      _
    %p120 = scmp.lt.s32.totalorder %s10, 3
    // Predicated region
    $region21: #{lgcn_forward.1} parent=5 // pred_check
      %p121 = pneg %p120
    $region22: #{lgcn_forward.1} parent=5 // pred_check_branch
      %123 = sbr.rel (%p121) target = $region24
    $region23: #{lgcn_forward.1} parent=5 // pred_region
      _
    $region24: #{lgcn_forward.1} parent=5 // pred_fallthru
      _
    %p124 = scmp.le.s32.totalorder 1, %s10
    %p125 = scmp.lt.s32.totalorder %s10, 4
    %p126 = pnand %p124, %p125
    %p127 = pneg %p126
    // Predicated region
    $region25: #{lgcn_forward.1} parent=5 // pred_check
      _
    $region26: #{lgcn_forward.1} parent=5 // pred_check_branch
      %129 = sbr.rel (%p126) target = $region28
    $region27: #{lgcn_forward.1} parent=5 // pred_region
      %s130 = ssub.s32 %s10, 1
      %p131 = pneg %p31
      %p132 = pneg %p28
      %p133 = pneg %p52
      %p134 = pneg %p49
      %p135 = pneg %p78
      %p136 = pneg %p75
      %p137 = scmp.lt.s32.totalorder %s15, 2
      %s138 = scalar_select %p137, %s15, 2
      %s139 = smul.addr %s138, 64
      %s140 = smul.addr %s139, 8
      %s141 = scalar_lea.vmem %s2, %s140
      %p142 = pneg %p99
      %p143 = pneg %p96
      %p144 = scmp.lt.s32.totalorder %s15, 2
      %s145 = scalar_select %p144, %s15, 2
      %s146 = smul.addr %s145, 64
      %s147 = smul.addr %s146, 8
      %s148 = scalar_lea.vmem %s2, %s147
      %p150 = scmp.eq.s32.totalorder %s15, 0
      // Predicated region
      $region29: #{lgcn_forward.1} parent=27 // pred_check
        %p151 = pneg %p150
      $region30: #{lgcn_forward.1} parent=27 // pred_check_branch
        %153 = sbr.rel (%p151) target = $region32
      $region31: #{lgcn_forward.1} parent=27 // pred_region
        %v154 = vld [vmem:[%s1] sm:$0xff]
        %v155 = vld [vmem:[%s1 + $0x8] sm:$0xff]
        %v156 = vld [vmem:[%s1 + $0x10] sm:$0xff]
        %v157 = vld [vmem:[%s1 + $0x18] sm:$0xff]
        %v158 = vld [vmem:[%s1 + $0x20] sm:$0xff]
        %v159 = vld [vmem:[%s1 + $0x28] sm:$0xff]
        %v160 = vld [vmem:[%s1 + $0x30] sm:$0xff]
        %v161 = vld [vmem:[%s1 + $0x38] sm:$0xff]
        %v162 = vld [vmem:[%s1 + $0x40] sm:$0xff]
        %v163 = vld [vmem:[%s1 + $0x48] sm:$0xff]
        %v164 = vld [vmem:[%s1 + $0x50] sm:$0xff]
        %v165 = vld [vmem:[%s1 + $0x58] sm:$0xff]
        %v166 = vld [vmem:[%s1 + $0x60] sm:$0xff]
        %v167 = vld [vmem:[%s1 + $0x68] sm:$0xff]
        %v168 = vld [vmem:[%s1 + $0x70] sm:$0xff]
        %v169 = vld [vmem:[%s1 + $0x78] sm:$0xff]
        %v170 = vld [vmem:[%s1 + $0x80] sm:$0xff]
        %v171 = vld [vmem:[%s1 + $0x88] sm:$0xff]
        %v172 = vld [vmem:[%s1 + $0x90] sm:$0xff]
        %v173 = vld [vmem:[%s1 + $0x98] sm:$0xff]
        %v174 = vld [vmem:[%s1 + $0xa0] sm:$0xff]
        %v175 = vld [vmem:[%s1 + $0xa8] sm:$0xff]
        %v176 = vld [vmem:[%s1 + $0xb0] sm:$0xff]
        %v177 = vld [vmem:[%s1 + $0xb8] sm:$0xff]
        %v178 = vld [vmem:[%s1 + $0xc0] sm:$0xff]
        %v179 = vld [vmem:[%s1 + $0xc8] sm:$0xff]
        %v180 = vld [vmem:[%s1 + $0xd0] sm:$0xff]
        %v181 = vld [vmem:[%s1 + $0xd8] sm:$0xff]
        %v182 = vld [vmem:[%s1 + $0xe0] sm:$0xff]
        %v183 = vld [vmem:[%s1 + $0xe8] sm:$0xff]
        %v184 = vld [vmem:[%s1 + $0xf0] sm:$0xff]
        %v185 = vld [vmem:[%s1 + $0xf8] sm:$0xff]
        %v186 = vld [vmem:[%s1 + $0x100] sm:$0xff]
        %v187 = vld [vmem:[%s1 + $0x108] sm:$0xff]
        %v188 = vld [vmem:[%s1 + $0x110] sm:$0xff]
        %v189 = vld [vmem:[%s1 + $0x118] sm:$0xff]
        %v190 = vld [vmem:[%s1 + $0x120] sm:$0xff]
        %v191 = vld [vmem:[%s1 + $0x128] sm:$0xff]
        %v192 = vld [vmem:[%s1 + $0x130] sm:$0xff]
        %v193 = vld [vmem:[%s1 + $0x138] sm:$0xff]
        %v194 = vld [vmem:[%s1 + $0x140] sm:$0xff]
        %v195 = vld [vmem:[%s1 + $0x148] sm:$0xff]
        %v196 = vld [vmem:[%s1 + $0x150] sm:$0xff]
        %v197 = vld [vmem:[%s1 + $0x158] sm:$0xff]
        %v198 = vld [vmem:[%s1 + $0x160] sm:$0xff]
        %v199 = vld [vmem:[%s1 + $0x168] sm:$0xff]
        %v200 = vld [vmem:[%s1 + $0x170] sm:$0xff]
        %v201 = vld [vmem:[%s1 + $0x178] sm:$0xff]
        %v202 = vld [vmem:[%s1 + $0x180] sm:$0xff]
        %v203 = vld [vmem:[%s1 + $0x188] sm:$0xff]
        %v204 = vld [vmem:[%s1 + $0x190] sm:$0xff]
        %v205 = vld [vmem:[%s1 + $0x198] sm:$0xff]
        %v206 = vld [vmem:[%s1 + $0x1a0] sm:$0xff]
        %v207 = vld [vmem:[%s1 + $0x1a8] sm:$0xff]
        %v208 = vld [vmem:[%s1 + $0x1b0] sm:$0xff]
        %v209 = vld [vmem:[%s1 + $0x1b8] sm:$0xff]
        %v210 = vld [vmem:[%s1 + $0x1c0] sm:$0xff]
        %v211 = vld [vmem:[%s1 + $0x1c8] sm:$0xff]
        %v212 = vld [vmem:[%s1 + $0x1d0] sm:$0xff]
        %v213 = vld [vmem:[%s1 + $0x1d8] sm:$0xff]
        %v214 = vld [vmem:[%s1 + $0x1e0] sm:$0xff]
        %v215 = vld [vmem:[%s1 + $0x1e8] sm:$0xff]
        %v216 = vld [vmem:[%s1 + $0x1f0] sm:$0xff]
        %v217 = vld [vmem:[%s1 + $0x1f8] sm:$0xff]
        %v218 = vpack.c.bf16 %v155, %v154
        %v219 = vpack.c.bf16 %v157, %v156
        %v220 = vpack.c.bf16 %v159, %v158
        %v221 = vpack.c.bf16 %v161, %v160
        %v222 = vpack.c.bf16 %v163, %v162
        %v223 = vpack.c.bf16 %v165, %v164
        %v224 = vpack.c.bf16 %v167, %v166
        %v225 = vpack.c.bf16 %v169, %v168
        %v226 = vpack.c.bf16 %v171, %v170
        %v227 = vpack.c.bf16 %v173, %v172
        %v228 = vpack.c.bf16 %v175, %v174
        %v229 = vpack.c.bf16 %v177, %v176
        %v230 = vpack.c.bf16 %v179, %v178
        %v231 = vpack.c.bf16 %v181, %v180
        %v232 = vpack.c.bf16 %v183, %v182
        %v233 = vpack.c.bf16 %v185, %v184
        %v234 = vpack.c.bf16 %v187, %v186
        %v235 = vpack.c.bf16 %v189, %v188
        %v236 = vpack.c.bf16 %v191, %v190
        %v237 = vpack.c.bf16 %v193, %v192
        %v238 = vpack.c.bf16 %v195, %v194
        %v239 = vpack.c.bf16 %v197, %v196
        %v240 = vpack.c.bf16 %v199, %v198
        %v241 = vpack.c.bf16 %v201, %v200
        %v242 = vpack.c.bf16 %v203, %v202
        %v243 = vpack.c.bf16 %v205, %v204
        %v244 = vpack.c.bf16 %v207, %v206
        %v245 = vpack.c.bf16 %v209, %v208
        %v246 = vpack.c.bf16 %v211, %v210
        %v247 = vpack.c.bf16 %v213, %v212
        %v248 = vpack.c.bf16 %v215, %v214
        %v249 = vpack.c.bf16 %v217, %v216
        %250 = vst [vmem:[#allocation2] sm:$0xff] %v218
        %251 = vst [vmem:[#allocation2 + $0x8] sm:$0xff] %v219
        %252 = vst [vmem:[#allocation2 + $0x10] sm:$0xff] %v220
        %253 = vst [vmem:[#allocation2 + $0x18] sm:$0xff] %v221
        %254 = vst [vmem:[#allocation2 + $0x20] sm:$0xff] %v222
        %255 = vst [vmem:[#allocation2 + $0x28] sm:$0xff] %v223
        %256 = vst [vmem:[#allocation2 + $0x30] sm:$0xff] %v224
        %257 = vst [vmem:[#allocation2 + $0x38] sm:$0xff] %v225
        %258 = vst [vmem:[#allocation2 + $0x40] sm:$0xff] %v226
        %259 = vst [vmem:[#allocation2 + $0x48] sm:$0xff] %v227
        %260 = vst [vmem:[#allocation2 + $0x50] sm:$0xff] %v228
        %261 = vst [vmem:[#allocation2 + $0x58] sm:$0xff] %v229
        %262 = vst [vmem:[#allocation2 + $0x60] sm:$0xff] %v230
        %263 = vst [vmem:[#allocation2 + $0x68] sm:$0xff] %v231
        %264 = vst [vmem:[#allocation2 + $0x70] sm:$0xff] %v232
        %265 = vst [vmem:[#allocation2 + $0x78] sm:$0xff] %v233
        %266 = vst [vmem:[#allocation2 + $0x80] sm:$0xff] %v234
        %267 = vst [vmem:[#allocation2 + $0x88] sm:$0xff] %v235
        %268 = vst [vmem:[#allocation2 + $0x90] sm:$0xff] %v236
        %269 = vst [vmem:[#allocation2 + $0x98] sm:$0xff] %v237
        %270 = vst [vmem:[#allocation2 + $0xa0] sm:$0xff] %v238
        %271 = vst [vmem:[#allocation2 + $0xa8] sm:$0xff] %v239
        %272 = vst [vmem:[#allocation2 + $0xb0] sm:$0xff] %v240
        %273 = vst [vmem:[#allocation2 + $0xb8] sm:$0xff] %v241
        %274 = vst [vmem:[#allocation2 + $0xc0] sm:$0xff] %v242
        %275 = vst [vmem:[#allocation2 + $0xc8] sm:$0xff] %v243
        %276 = vst [vmem:[#allocation2 + $0xd0] sm:$0xff] %v244
        %277 = vst [vmem:[#allocation2 + $0xd8] sm:$0xff] %v245
        %278 = vst [vmem:[#allocation2 + $0xe0] sm:$0xff] %v246
        %279 = vst [vmem:[#allocation2 + $0xe8] sm:$0xff] %v247
        %280 = vst [vmem:[#allocation2 + $0xf0] sm:$0xff] %v248
        %281 = vst [vmem:[#allocation2 + $0xf8] sm:$0xff] %v249
        %282 = vst [vmem:[#allocation3] sm:$0xff] %v154
        %283 = vst [vmem:[#allocation3 + $0x8] sm:$0xff] %v155
        %284 = vst [vmem:[#allocation3 + $0x10] sm:$0xff] %v156
        %285 = vst [vmem:[#allocation3 + $0x18] sm:$0xff] %v157
        %286 = vst [vmem:[#allocation3 + $0x20] sm:$0xff] %v158
        %287 = vst [vmem:[#allocation3 + $0x28] sm:$0xff] %v159
        %288 = vst [vmem:[#allocation3 + $0x30] sm:$0xff] %v160
        %289 = vst [vmem:[#allocation3 + $0x38] sm:$0xff] %v161
        %290 = vst [vmem:[#allocation3 + $0x40] sm:$0xff] %v162
        %291 = vst [vmem:[#allocation3 + $0x48] sm:$0xff] %v163
        %292 = vst [vmem:[#allocation3 + $0x50] sm:$0xff] %v164
        %293 = vst [vmem:[#allocation3 + $0x58] sm:$0xff] %v165
        %294 = vst [vmem:[#allocation3 + $0x60] sm:$0xff] %v166
        %295 = vst [vmem:[#allocation3 + $0x68] sm:$0xff] %v167
        %296 = vst [vmem:[#allocation3 + $0x70] sm:$0xff] %v168
        %297 = vst [vmem:[#allocation3 + $0x78] sm:$0xff] %v169
        %298 = vst [vmem:[#allocation3 + $0x80] sm:$0xff] %v170
        %299 = vst [vmem:[#allocation3 + $0x88] sm:$0xff] %v171
        %300 = vst [vmem:[#allocation3 + $0x90] sm:$0xff] %v172
        %301 = vst [vmem:[#allocation3 + $0x98] sm:$0xff] %v173
        %302 = vst [vmem:[#allocation3 + $0xa0] sm:$0xff] %v174
        %303 = vst [vmem:[#allocation3 + $0xa8] sm:$0xff] %v175
        %304 = vst [vmem:[#allocation3 + $0xb0] sm:$0xff] %v176
        %305 = vst [vmem:[#allocation3 + $0xb8] sm:$0xff] %v177
        %306 = vst [vmem:[#allocation3 + $0xc0] sm:$0xff] %v178
        %307 = vst [vmem:[#allocation3 + $0xc8] sm:$0xff] %v179
        %308 = vst [vmem:[#allocation3 + $0xd0] sm:$0xff] %v180
        %309 = vst [vmem:[#allocation3 + $0xd8] sm:$0xff] %v181
        %310 = vst [vmem:[#allocation3 + $0xe0] sm:$0xff] %v182
        %311 = vst [vmem:[#allocation3 + $0xe8] sm:$0xff] %v183
        %312 = vst [vmem:[#allocation3 + $0xf0] sm:$0xff] %v184
        %313 = vst [vmem:[#allocation3 + $0xf8] sm:$0xff] %v185
        %314 = vst [vmem:[#allocation3 + $0x100] sm:$0xff] %v186
        %315 = vst [vmem:[#allocation3 + $0x108] sm:$0xff] %v187
        %316 = vst [vmem:[#allocation3 + $0x110] sm:$0xff] %v188
        %317 = vst [vmem:[#allocation3 + $0x118] sm:$0xff] %v189
        %318 = vst [vmem:[#allocation3 + $0x120] sm:$0xff] %v190
        %319 = vst [vmem:[#allocation3 + $0x128] sm:$0xff] %v191
        %320 = vst [vmem:[#allocation3 + $0x130] sm:$0xff] %v192
        %321 = vst [vmem:[#allocation3 + $0x138] sm:$0xff] %v193
        %322 = vst [vmem:[#allocation3 + $0x140] sm:$0xff] %v194
        %323 = vst [vmem:[#allocation3 + $0x148] sm:$0xff] %v195
        %324 = vst [vmem:[#allocation3 + $0x150] sm:$0xff] %v196
        %325 = vst [vmem:[#allocation3 + $0x158] sm:$0xff] %v197
        %326 = vst [vmem:[#allocation3 + $0x160] sm:$0xff] %v198
        %327 = vst [vmem:[#allocation3 + $0x168] sm:$0xff] %v199
        %328 = vst [vmem:[#allocation3 + $0x170] sm:$0xff] %v200
        %329 = vst [vmem:[#allocation3 + $0x178] sm:$0xff] %v201
        %330 = vst [vmem:[#allocation3 + $0x180] sm:$0xff] %v202
        %331 = vst [vmem:[#allocation3 + $0x188] sm:$0xff] %v203
        %332 = vst [vmem:[#allocation3 + $0x190] sm:$0xff] %v204
        %333 = vst [vmem:[#allocation3 + $0x198] sm:$0xff] %v205
        %334 = vst [vmem:[#allocation3 + $0x1a0] sm:$0xff] %v206
        %335 = vst [vmem:[#allocation3 + $0x1a8] sm:$0xff] %v207
        %336 = vst [vmem:[#allocation3 + $0x1b0] sm:$0xff] %v208
        %337 = vst [vmem:[#allocation3 + $0x1b8] sm:$0xff] %v209
        %338 = vst [vmem:[#allocation3 + $0x1c0] sm:$0xff] %v210
        %339 = vst [vmem:[#allocation3 + $0x1c8] sm:$0xff] %v211
        %340 = vst [vmem:[#allocation3 + $0x1d0] sm:$0xff] %v212
        %341 = vst [vmem:[#allocation3 + $0x1d8] sm:$0xff] %v213
        %342 = vst [vmem:[#allocation3 + $0x1e0] sm:$0xff] %v214
        %343 = vst [vmem:[#allocation3 + $0x1e8] sm:$0xff] %v215
        %344 = vst [vmem:[#allocation3 + $0x1f0] sm:$0xff] %v216
        %345 = vst [vmem:[#allocation3 + $0x1f8] sm:$0xff] %v217
      $region32: #{lgcn_forward.1} parent=27 // pred_fallthru
        _
      %s346 = sand.u32 %s15, 1
      %s347 = ssub.s32 1, %s346
      %v348 = vld [vmem:[%s0] sm:$0xff]
      %v349 = vld [vmem:[%s0 + $0x8] sm:$0xff]
      %v350 = vld [vmem:[%s0 + $0x10] sm:$0xff]
      %v351 = vld [vmem:[%s0 + $0x18] sm:$0xff]
      %v352 = vld [vmem:[%s0 + $0x20] sm:$0xff]
      %v353 = vld [vmem:[%s0 + $0x28] sm:$0xff]
      %v354 = vld [vmem:[%s0 + $0x30] sm:$0xff]
      %v355 = vld [vmem:[%s0 + $0x38] sm:$0xff]
      %v356 = vld [vmem:[%s0 + $0x40] sm:$0xff]
      %v357 = vld [vmem:[%s0 + $0x48] sm:$0xff]
      %v358 = vld [vmem:[%s0 + $0x50] sm:$0xff]
      %v359 = vld [vmem:[%s0 + $0x58] sm:$0xff]
      %v360 = vld [vmem:[%s0 + $0x60] sm:$0xff]
      %v361 = vld [vmem:[%s0 + $0x68] sm:$0xff]
      %v362 = vld [vmem:[%s0 + $0x70] sm:$0xff]
      %v363 = vld [vmem:[%s0 + $0x78] sm:$0xff]
      %v364 = vld [vmem:[%s0 + $0x80] sm:$0xff]
      %v365 = vld [vmem:[%s0 + $0x88] sm:$0xff]
      %v366 = vld [vmem:[%s0 + $0x90] sm:$0xff]
      %v367 = vld [vmem:[%s0 + $0x98] sm:$0xff]
      %v368 = vld [vmem:[%s0 + $0xa0] sm:$0xff]
      %v369 = vld [vmem:[%s0 + $0xa8] sm:$0xff]
      %v370 = vld [vmem:[%s0 + $0xb0] sm:$0xff]
      %v371 = vld [vmem:[%s0 + $0xb8] sm:$0xff]
      %v372 = vld [vmem:[%s0 + $0xc0] sm:$0xff]
      %v373 = vld [vmem:[%s0 + $0xc8] sm:$0xff]
      %v374 = vld [vmem:[%s0 + $0xd0] sm:$0xff]
      %v375 = vld [vmem:[%s0 + $0xd8] sm:$0xff]
      %v376 = vld [vmem:[%s0 + $0xe0] sm:$0xff]
      %v377 = vld [vmem:[%s0 + $0xe8] sm:$0xff]
      %v378 = vld [vmem:[%s0 + $0xf0] sm:$0xff]
      %v379 = vld [vmem:[%s0 + $0xf8] sm:$0xff]
      %v380 = vld [vmem:[%s0 + $0x100] sm:$0xff]
      %v381 = vld [vmem:[%s0 + $0x108] sm:$0xff]
      %v382 = vld [vmem:[%s0 + $0x110] sm:$0xff]
      %v383 = vld [vmem:[%s0 + $0x118] sm:$0xff]
      %v384 = vld [vmem:[%s0 + $0x120] sm:$0xff]
      %v385 = vld [vmem:[%s0 + $0x128] sm:$0xff]
      %v386 = vld [vmem:[%s0 + $0x130] sm:$0xff]
      %v387 = vld [vmem:[%s0 + $0x138] sm:$0xff]
      %v388 = vld [vmem:[%s0 + $0x140] sm:$0xff]
      %v389 = vld [vmem:[%s0 + $0x148] sm:$0xff]
      %v390 = vld [vmem:[%s0 + $0x150] sm:$0xff]
      %v391 = vld [vmem:[%s0 + $0x158] sm:$0xff]
      %v392 = vld [vmem:[%s0 + $0x160] sm:$0xff]
      %v393 = vld [vmem:[%s0 + $0x168] sm:$0xff]
      %v394 = vld [vmem:[%s0 + $0x170] sm:$0xff]
      %v395 = vld [vmem:[%s0 + $0x178] sm:$0xff]
      %v396 = vld [vmem:[%s0 + $0x180] sm:$0xff]
      %v397 = vld [vmem:[%s0 + $0x188] sm:$0xff]
      %v398 = vld [vmem:[%s0 + $0x190] sm:$0xff]
      %v399 = vld [vmem:[%s0 + $0x198] sm:$0xff]
      %v400 = vld [vmem:[%s0 + $0x1a0] sm:$0xff]
      %v401 = vld [vmem:[%s0 + $0x1a8] sm:$0xff]
      %v402 = vld [vmem:[%s0 + $0x1b0] sm:$0xff]
      %v403 = vld [vmem:[%s0 + $0x1b8] sm:$0xff]
      %v404 = vld [vmem:[%s0 + $0x1c0] sm:$0xff]
      %v405 = vld [vmem:[%s0 + $0x1c8] sm:$0xff]
      %v406 = vld [vmem:[%s0 + $0x1d0] sm:$0xff]
      %v407 = vld [vmem:[%s0 + $0x1d8] sm:$0xff]
      %v408 = vld [vmem:[%s0 + $0x1e0] sm:$0xff]
      %v409 = vld [vmem:[%s0 + $0x1e8] sm:$0xff]
      %v410 = vld [vmem:[%s0 + $0x1f0] sm:$0xff]
      %v411 = vld [vmem:[%s0 + $0x1f8] sm:$0xff]
      %v412 = vld [vmem:[%s0 + $0x200] sm:$0xff]
      %v413 = vld [vmem:[%s0 + $0x208] sm:$0xff]
      %v414 = vld [vmem:[%s0 + $0x210] sm:$0xff]
      %v415 = vld [vmem:[%s0 + $0x218] sm:$0xff]
      %v416 = vld [vmem:[%s0 + $0x220] sm:$0xff]
      %v417 = vld [vmem:[%s0 + $0x228] sm:$0xff]
      %v418 = vld [vmem:[%s0 + $0x230] sm:$0xff]
      %v419 = vld [vmem:[%s0 + $0x238] sm:$0xff]
      %v420 = vld [vmem:[%s0 + $0x240] sm:$0xff]
      %v421 = vld [vmem:[%s0 + $0x248] sm:$0xff]
      %v422 = vld [vmem:[%s0 + $0x250] sm:$0xff]
      %v423 = vld [vmem:[%s0 + $0x258] sm:$0xff]
      %v424 = vld [vmem:[%s0 + $0x260] sm:$0xff]
      %v425 = vld [vmem:[%s0 + $0x268] sm:$0xff]
      %v426 = vld [vmem:[%s0 + $0x270] sm:$0xff]
      %v427 = vld [vmem:[%s0 + $0x278] sm:$0xff]
      %v428 = vld [vmem:[%s0 + $0x280] sm:$0xff]
      %v429 = vld [vmem:[%s0 + $0x288] sm:$0xff]
      %v430 = vld [vmem:[%s0 + $0x290] sm:$0xff]
      %v431 = vld [vmem:[%s0 + $0x298] sm:$0xff]
      %v432 = vld [vmem:[%s0 + $0x2a0] sm:$0xff]
      %v433 = vld [vmem:[%s0 + $0x2a8] sm:$0xff]
      %v434 = vld [vmem:[%s0 + $0x2b0] sm:$0xff]
      %v435 = vld [vmem:[%s0 + $0x2b8] sm:$0xff]
      %v436 = vld [vmem:[%s0 + $0x2c0] sm:$0xff]
      %v437 = vld [vmem:[%s0 + $0x2c8] sm:$0xff]
      %v438 = vld [vmem:[%s0 + $0x2d0] sm:$0xff]
      %v439 = vld [vmem:[%s0 + $0x2d8] sm:$0xff]
      %v440 = vld [vmem:[%s0 + $0x2e0] sm:$0xff]
      %v441 = vld [vmem:[%s0 + $0x2e8] sm:$0xff]
      %v442 = vld [vmem:[%s0 + $0x2f0] sm:$0xff]
      %v443 = vld [vmem:[%s0 + $0x2f8] sm:$0xff]
      %v444 = vld [vmem:[%s0 + $0x300] sm:$0xff]
      %v445 = vld [vmem:[%s0 + $0x308] sm:$0xff]
      %v446 = vld [vmem:[%s0 + $0x310] sm:$0xff]
      %v447 = vld [vmem:[%s0 + $0x318] sm:$0xff]
      %v448 = vld [vmem:[%s0 + $0x320] sm:$0xff]
      %v449 = vld [vmem:[%s0 + $0x328] sm:$0xff]
      %v450 = vld [vmem:[%s0 + $0x330] sm:$0xff]
      %v451 = vld [vmem:[%s0 + $0x338] sm:$0xff]
      %v452 = vld [vmem:[%s0 + $0x340] sm:$0xff]
      %v453 = vld [vmem:[%s0 + $0x348] sm:$0xff]
      %v454 = vld [vmem:[%s0 + $0x350] sm:$0xff]
      %v455 = vld [vmem:[%s0 + $0x358] sm:$0xff]
      %v456 = vld [vmem:[%s0 + $0x360] sm:$0xff]
      %v457 = vld [vmem:[%s0 + $0x368] sm:$0xff]
      %v458 = vld [vmem:[%s0 + $0x370] sm:$0xff]
      %v459 = vld [vmem:[%s0 + $0x378] sm:$0xff]
      %v460 = vld [vmem:[%s0 + $0x380] sm:$0xff]
      %v461 = vld [vmem:[%s0 + $0x388] sm:$0xff]
      %v462 = vld [vmem:[%s0 + $0x390] sm:$0xff]
      %v463 = vld [vmem:[%s0 + $0x398] sm:$0xff]
      %v464 = vld [vmem:[%s0 + $0x3a0] sm:$0xff]
      %v465 = vld [vmem:[%s0 + $0x3a8] sm:$0xff]
      %v466 = vld [vmem:[%s0 + $0x3b0] sm:$0xff]
      %v467 = vld [vmem:[%s0 + $0x3b8] sm:$0xff]
      %v468 = vld [vmem:[%s0 + $0x3c0] sm:$0xff]
      %v469 = vld [vmem:[%s0 + $0x3c8] sm:$0xff]
      %v470 = vld [vmem:[%s0 + $0x3d0] sm:$0xff]
      %v471 = vld [vmem:[%s0 + $0x3d8] sm:$0xff]
      %v472 = vld [vmem:[%s0 + $0x3e0] sm:$0xff]
      %v473 = vld [vmem:[%s0 + $0x3e8] sm:$0xff]
      %v474 = vld [vmem:[%s0 + $0x3f0] sm:$0xff]
      %v475 = vld [vmem:[%s0 + $0x3f8] sm:$0xff]
      %s476 = smul.u32 %s346, 32
      %s477 = smul.addr %s476, 8
      %s478 = scalar_lea.vmem [#allocation2], %s477
      %v479 = vld [vmem:[%s478] sm:$0xff]
      %v480 = vld [vmem:[%s478 + $0x8] sm:$0xff]
      %v481 = vld [vmem:[%s478 + $0x10] sm:$0xff]
      %v482 = vld [vmem:[%s478 + $0x18] sm:$0xff]
      %v483 = vld [vmem:[%s478 + $0x20] sm:$0xff]
      %v484 = vld [vmem:[%s478 + $0x28] sm:$0xff]
      %v485 = vld [vmem:[%s478 + $0x30] sm:$0xff]
      %v486 = vld [vmem:[%s478 + $0x38] sm:$0xff]
      %v487 = vld [vmem:[%s478 + $0x40] sm:$0xff]
      %v488 = vld [vmem:[%s478 + $0x48] sm:$0xff]
      %v489 = vld [vmem:[%s478 + $0x50] sm:$0xff]
      %v490 = vld [vmem:[%s478 + $0x58] sm:$0xff]
      %v491 = vld [vmem:[%s478 + $0x60] sm:$0xff]
      %v492 = vld [vmem:[%s478 + $0x68] sm:$0xff]
      %v493 = vld [vmem:[%s478 + $0x70] sm:$0xff]
      %v494 = vld [vmem:[%s478 + $0x78] sm:$0xff]
      %v495 = vld [vmem:[%s478 + $0x80] sm:$0xff]
      %v496 = vld [vmem:[%s478 + $0x88] sm:$0xff]
      %v497 = vld [vmem:[%s478 + $0x90] sm:$0xff]
      %v498 = vld [vmem:[%s478 + $0x98] sm:$0xff]
      %v499 = vld [vmem:[%s478 + $0xa0] sm:$0xff]
      %v500 = vld [vmem:[%s478 + $0xa8] sm:$0xff]
      %v501 = vld [vmem:[%s478 + $0xb0] sm:$0xff]
      %v502 = vld [vmem:[%s478 + $0xb8] sm:$0xff]
      %v503 = vld [vmem:[%s478 + $0xc0] sm:$0xff]
      %v504 = vld [vmem:[%s478 + $0xc8] sm:$0xff]
      %v505 = vld [vmem:[%s478 + $0xd0] sm:$0xff]
      %v506 = vld [vmem:[%s478 + $0xd8] sm:$0xff]
      %v507 = vld [vmem:[%s478 + $0xe0] sm:$0xff]
      %v508 = vld [vmem:[%s478 + $0xe8] sm:$0xff]
      %v509 = vld [vmem:[%s478 + $0xf0] sm:$0xff]
      %v510 = vld [vmem:[%s478 + $0xf8] sm:$0xff]
      %v639 = vunpack.c.l.b16 %v348
      %v640 = vunpack.c.h.b16 %v348
      %v641 = vunpack.c.l.b16 %v349
      %v642 = vunpack.c.h.b16 %v349
      %v643 = vunpack.c.l.b16 %v350
      %v644 = vunpack.c.h.b16 %v350
      %v645 = vunpack.c.l.b16 %v351
      %v646 = vunpack.c.h.b16 %v351
      %v647 = vunpack.c.l.b16 %v352
      %v648 = vunpack.c.h.b16 %v352
      %v649 = vunpack.c.l.b16 %v353
      %v650 = vunpack.c.h.b16 %v353
      %v651 = vunpack.c.l.b16 %v354
      %v652 = vunpack.c.h.b16 %v354
      %v653 = vunpack.c.l.b16 %v355
      %v654 = vunpack.c.h.b16 %v355
      %v655 = vunpack.c.l.b16 %v356
      %v656 = vunpack.c.h.b16 %v356
      %v657 = vunpack.c.l.b16 %v357
      %v658 = vunpack.c.h.b16 %v357
      %v659 = vunpack.c.l.b16 %v358
      %v660 = vunpack.c.h.b16 %v358
      %v661 = vunpack.c.l.b16 %v359
      %v662 = vunpack.c.h.b16 %v359
      %v663 = vunpack.c.l.b16 %v360
      %v664 = vunpack.c.h.b16 %v360
      %v665 = vunpack.c.l.b16 %v361
      %v666 = vunpack.c.h.b16 %v361
      %v667 = vunpack.c.l.b16 %v362
      %v668 = vunpack.c.h.b16 %v362
      %v669 = vunpack.c.l.b16 %v363
      %v670 = vunpack.c.h.b16 %v363
      %v671 = vunpack.c.l.b16 %v364
      %v672 = vunpack.c.h.b16 %v364
      %v673 = vunpack.c.l.b16 %v365
      %v674 = vunpack.c.h.b16 %v365
      %v675 = vunpack.c.l.b16 %v366
      %v676 = vunpack.c.h.b16 %v366
      %v677 = vunpack.c.l.b16 %v367
      %v678 = vunpack.c.h.b16 %v367
      %v679 = vunpack.c.l.b16 %v368
      %v680 = vunpack.c.h.b16 %v368
      %v681 = vunpack.c.l.b16 %v369
      %v682 = vunpack.c.h.b16 %v369
      %v683 = vunpack.c.l.b16 %v370
      %v684 = vunpack.c.h.b16 %v370
      %v685 = vunpack.c.l.b16 %v371
      %v686 = vunpack.c.h.b16 %v371
      %v687 = vunpack.c.l.b16 %v372
      %v688 = vunpack.c.h.b16 %v372
      %v689 = vunpack.c.l.b16 %v373
      %v690 = vunpack.c.h.b16 %v373
      %v691 = vunpack.c.l.b16 %v374
      %v692 = vunpack.c.h.b16 %v374
      %v693 = vunpack.c.l.b16 %v375
      %v694 = vunpack.c.h.b16 %v375
      %v695 = vunpack.c.l.b16 %v376
      %v696 = vunpack.c.h.b16 %v376
      %v697 = vunpack.c.l.b16 %v377
      %v698 = vunpack.c.h.b16 %v377
      %v699 = vunpack.c.l.b16 %v378
      %v700 = vunpack.c.h.b16 %v378
      %v701 = vunpack.c.l.b16 %v379
      %v702 = vunpack.c.h.b16 %v379
      %v703 = vunpack.c.l.b16 %v380
      %v704 = vunpack.c.h.b16 %v380
      %v705 = vunpack.c.l.b16 %v381
      %v706 = vunpack.c.h.b16 %v381
      %v707 = vunpack.c.l.b16 %v382
      %v708 = vunpack.c.h.b16 %v382
      %v709 = vunpack.c.l.b16 %v383
      %v710 = vunpack.c.h.b16 %v383
      %v711 = vunpack.c.l.b16 %v384
      %v712 = vunpack.c.h.b16 %v384
      %v713 = vunpack.c.l.b16 %v385
      %v714 = vunpack.c.h.b16 %v385
      %v715 = vunpack.c.l.b16 %v386
      %v716 = vunpack.c.h.b16 %v386
      %v717 = vunpack.c.l.b16 %v387
      %v718 = vunpack.c.h.b16 %v387
      %v719 = vunpack.c.l.b16 %v388
      %v720 = vunpack.c.h.b16 %v388
      %v721 = vunpack.c.l.b16 %v389
      %v722 = vunpack.c.h.b16 %v389
      %v723 = vunpack.c.l.b16 %v390
      %v724 = vunpack.c.h.b16 %v390
      %v725 = vunpack.c.l.b16 %v391
      %v726 = vunpack.c.h.b16 %v391
      %v727 = vunpack.c.l.b16 %v392
      %v728 = vunpack.c.h.b16 %v392
      %v729 = vunpack.c.l.b16 %v393
      %v730 = vunpack.c.h.b16 %v393
      %v731 = vunpack.c.l.b16 %v394
      %v732 = vunpack.c.h.b16 %v394
      %v733 = vunpack.c.l.b16 %v395
      %v734 = vunpack.c.h.b16 %v395
      %v735 = vunpack.c.l.b16 %v396
      %v736 = vunpack.c.h.b16 %v396
      %v737 = vunpack.c.l.b16 %v397
      %v738 = vunpack.c.h.b16 %v397
      %v739 = vunpack.c.l.b16 %v398
      %v740 = vunpack.c.h.b16 %v398
      %v741 = vunpack.c.l.b16 %v399
      %v742 = vunpack.c.h.b16 %v399
      %v743 = vunpack.c.l.b16 %v400
      %v744 = vunpack.c.h.b16 %v400
      %v745 = vunpack.c.l.b16 %v401
      %v746 = vunpack.c.h.b16 %v401
      %v747 = vunpack.c.l.b16 %v402
      %v748 = vunpack.c.h.b16 %v402
      %v749 = vunpack.c.l.b16 %v403
      %v750 = vunpack.c.h.b16 %v403
      %v751 = vunpack.c.l.b16 %v404
      %v752 = vunpack.c.h.b16 %v404
      %v753 = vunpack.c.l.b16 %v405
      %v754 = vunpack.c.h.b16 %v405
      %v755 = vunpack.c.l.b16 %v406
      %v756 = vunpack.c.h.b16 %v406
      %v757 = vunpack.c.l.b16 %v407
      %v758 = vunpack.c.h.b16 %v407
      %v759 = vunpack.c.l.b16 %v408
      %v760 = vunpack.c.h.b16 %v408
      %v761 = vunpack.c.l.b16 %v409
      %v762 = vunpack.c.h.b16 %v409
      %v763 = vunpack.c.l.b16 %v410
      %v764 = vunpack.c.h.b16 %v410
      %v765 = vunpack.c.l.b16 %v411
      %v766 = vunpack.c.h.b16 %v411
      %v767 = vunpack.c.l.b16 %v412
      %v768 = vunpack.c.h.b16 %v412
      %v769 = vunpack.c.l.b16 %v413
      %v770 = vunpack.c.h.b16 %v413
      %v771 = vunpack.c.l.b16 %v414
      %v772 = vunpack.c.h.b16 %v414
      %v773 = vunpack.c.l.b16 %v415
      %v774 = vunpack.c.h.b16 %v415
      %v775 = vunpack.c.l.b16 %v416
      %v776 = vunpack.c.h.b16 %v416
      %v777 = vunpack.c.l.b16 %v417
      %v778 = vunpack.c.h.b16 %v417
      %v779 = vunpack.c.l.b16 %v418
      %v780 = vunpack.c.h.b16 %v418
      %v781 = vunpack.c.l.b16 %v419
      %v782 = vunpack.c.h.b16 %v419
      %v783 = vunpack.c.l.b16 %v420
      %v784 = vunpack.c.h.b16 %v420
      %v785 = vunpack.c.l.b16 %v421
      %v786 = vunpack.c.h.b16 %v421
      %v787 = vunpack.c.l.b16 %v422
      %v788 = vunpack.c.h.b16 %v422
      %v789 = vunpack.c.l.b16 %v423
      %v790 = vunpack.c.h.b16 %v423
      %v791 = vunpack.c.l.b16 %v424
      %v792 = vunpack.c.h.b16 %v424
      %v793 = vunpack.c.l.b16 %v425
      %v794 = vunpack.c.h.b16 %v425
      %v795 = vunpack.c.l.b16 %v426
      %v796 = vunpack.c.h.b16 %v426
      %v797 = vunpack.c.l.b16 %v427
      %v798 = vunpack.c.h.b16 %v427
      %v799 = vunpack.c.l.b16 %v428
      %v800 = vunpack.c.h.b16 %v428
      %v801 = vunpack.c.l.b16 %v429
      %v802 = vunpack.c.h.b16 %v429
      %v803 = vunpack.c.l.b16 %v430
      %v804 = vunpack.c.h.b16 %v430
      %v805 = vunpack.c.l.b16 %v431
      %v806 = vunpack.c.h.b16 %v431
      %v807 = vunpack.c.l.b16 %v432
      %v808 = vunpack.c.h.b16 %v432
      %v809 = vunpack.c.l.b16 %v433
      %v810 = vunpack.c.h.b16 %v433
      %v811 = vunpack.c.l.b16 %v434
      %v812 = vunpack.c.h.b16 %v434
      %v813 = vunpack.c.l.b16 %v435
      %v814 = vunpack.c.h.b16 %v435
      %v815 = vunpack.c.l.b16 %v436
      %v816 = vunpack.c.h.b16 %v436
      %v817 = vunpack.c.l.b16 %v437
      %v818 = vunpack.c.h.b16 %v437
      %v819 = vunpack.c.l.b16 %v438
      %v820 = vunpack.c.h.b16 %v438
      %v821 = vunpack.c.l.b16 %v439
      %v822 = vunpack.c.h.b16 %v439
      %v823 = vunpack.c.l.b16 %v440
      %v824 = vunpack.c.h.b16 %v440
      %v825 = vunpack.c.l.b16 %v441
      %v826 = vunpack.c.h.b16 %v441
      %v827 = vunpack.c.l.b16 %v442
      %v828 = vunpack.c.h.b16 %v442
      %v829 = vunpack.c.l.b16 %v443
      %v830 = vunpack.c.h.b16 %v443
      %v831 = vunpack.c.l.b16 %v444
      %v832 = vunpack.c.h.b16 %v444
      %v833 = vunpack.c.l.b16 %v445
      %v834 = vunpack.c.h.b16 %v445
      %v835 = vunpack.c.l.b16 %v446
      %v836 = vunpack.c.h.b16 %v446
      %v837 = vunpack.c.l.b16 %v447
      %v838 = vunpack.c.h.b16 %v447
      %v839 = vunpack.c.l.b16 %v448
      %v840 = vunpack.c.h.b16 %v448
      %v841 = vunpack.c.l.b16 %v449
      %v842 = vunpack.c.h.b16 %v449
      %v843 = vunpack.c.l.b16 %v450
      %v844 = vunpack.c.h.b16 %v450
      %v845 = vunpack.c.l.b16 %v451
      %v846 = vunpack.c.h.b16 %v451
      %v847 = vunpack.c.l.b16 %v452
      %v848 = vunpack.c.h.b16 %v452
      %v849 = vunpack.c.l.b16 %v453
      %v850 = vunpack.c.h.b16 %v453
      %v851 = vunpack.c.l.b16 %v454
      %v852 = vunpack.c.h.b16 %v454
      %v853 = vunpack.c.l.b16 %v455
      %v854 = vunpack.c.h.b16 %v455
      %v855 = vunpack.c.l.b16 %v456
      %v856 = vunpack.c.h.b16 %v456
      %v857 = vunpack.c.l.b16 %v457
      %v858 = vunpack.c.h.b16 %v457
      %v859 = vunpack.c.l.b16 %v458
      %v860 = vunpack.c.h.b16 %v458
      %v861 = vunpack.c.l.b16 %v459
      %v862 = vunpack.c.h.b16 %v459
      %v863 = vunpack.c.l.b16 %v460
      %v864 = vunpack.c.h.b16 %v460
      %v865 = vunpack.c.l.b16 %v461
      %v866 = vunpack.c.h.b16 %v461
      %v867 = vunpack.c.l.b16 %v462
      %v868 = vunpack.c.h.b16 %v462
      %v869 = vunpack.c.l.b16 %v463
      %v870 = vunpack.c.h.b16 %v463
      %v871 = vunpack.c.l.b16 %v464
      %v872 = vunpack.c.h.b16 %v464
      %v873 = vunpack.c.l.b16 %v465
      %v874 = vunpack.c.h.b16 %v465
      %v875 = vunpack.c.l.b16 %v466
      %v876 = vunpack.c.h.b16 %v466
      %v877 = vunpack.c.l.b16 %v467
      %v878 = vunpack.c.h.b16 %v467
      %v879 = vunpack.c.l.b16 %v468
      %v880 = vunpack.c.h.b16 %v468
      %v881 = vunpack.c.l.b16 %v469
      %v882 = vunpack.c.h.b16 %v469
      %v883 = vunpack.c.l.b16 %v470
      %v884 = vunpack.c.h.b16 %v470
      %v885 = vunpack.c.l.b16 %v471
      %v886 = vunpack.c.h.b16 %v471
      %v887 = vunpack.c.l.b16 %v472
      %v888 = vunpack.c.h.b16 %v472
      %v889 = vunpack.c.l.b16 %v473
      %v890 = vunpack.c.h.b16 %v473
      %v891 = vunpack.c.l.b16 %v474
      %v892 = vunpack.c.h.b16 %v474
      %v893 = vunpack.c.l.b16 %v475
      %v894 = vunpack.c.h.b16 %v475
      %v895 = vpack.c.b16 %v643, %v639
      %v896 = vpack.c.b16 %v644, %v640
      %v897 = vpack.c.b16 %v645, %v641
      %v898 = vpack.c.b16 %v646, %v642
      %v899 = vpack.c.b16 %v651, %v647
      %v900 = vpack.c.b16 %v652, %v648
      %v901 = vpack.c.b16 %v653, %v649
      %v902 = vpack.c.b16 %v654, %v650
      %v903 = vpack.c.b16 %v659, %v655
      %v904 = vpack.c.b16 %v660, %v656
      %v905 = vpack.c.b16 %v661, %v657
      %v906 = vpack.c.b16 %v662, %v658
      %v907 = vpack.c.b16 %v667, %v663
      %v908 = vpack.c.b16 %v668, %v664
      %v909 = vpack.c.b16 %v669, %v665
      %v910 = vpack.c.b16 %v670, %v666
      %v911 = vpack.c.b16 %v675, %v671
      %v912 = vpack.c.b16 %v676, %v672
      %v913 = vpack.c.b16 %v677, %v673
      %v914 = vpack.c.b16 %v678, %v674
      %v915 = vpack.c.b16 %v683, %v679
      %v916 = vpack.c.b16 %v684, %v680
      %v917 = vpack.c.b16 %v685, %v681
      %v918 = vpack.c.b16 %v686, %v682
      %v919 = vpack.c.b16 %v691, %v687
      %v920 = vpack.c.b16 %v692, %v688
      %v921 = vpack.c.b16 %v693, %v689
      %v922 = vpack.c.b16 %v694, %v690
      %v923 = vpack.c.b16 %v699, %v695
      %v924 = vpack.c.b16 %v700, %v696
      %v925 = vpack.c.b16 %v701, %v697
      %v926 = vpack.c.b16 %v702, %v698
      %v927 = vpack.c.b16 %v707, %v703
      %v928 = vpack.c.b16 %v708, %v704
      %v929 = vpack.c.b16 %v709, %v705
      %v930 = vpack.c.b16 %v710, %v706
      %v931 = vpack.c.b16 %v715, %v711
      %v932 = vpack.c.b16 %v716, %v712
      %v933 = vpack.c.b16 %v717, %v713
      %v934 = vpack.c.b16 %v718, %v714
      %v935 = vpack.c.b16 %v723, %v719
      %v936 = vpack.c.b16 %v724, %v720
      %v937 = vpack.c.b16 %v725, %v721
      %v938 = vpack.c.b16 %v726, %v722
      %v939 = vpack.c.b16 %v731, %v727
      %v940 = vpack.c.b16 %v732, %v728
      %v941 = vpack.c.b16 %v733, %v729
      %v942 = vpack.c.b16 %v734, %v730
      %v943 = vpack.c.b16 %v739, %v735
      %v944 = vpack.c.b16 %v740, %v736
      %v945 = vpack.c.b16 %v741, %v737
      %v946 = vpack.c.b16 %v742, %v738
      %v947 = vpack.c.b16 %v747, %v743
      %v948 = vpack.c.b16 %v748, %v744
      %v949 = vpack.c.b16 %v749, %v745
      %v950 = vpack.c.b16 %v750, %v746
      %v951 = vpack.c.b16 %v755, %v751
      %v952 = vpack.c.b16 %v756, %v752
      %v953 = vpack.c.b16 %v757, %v753
      %v954 = vpack.c.b16 %v758, %v754
      %v955 = vpack.c.b16 %v763, %v759
      %v956 = vpack.c.b16 %v764, %v760
      %v957 = vpack.c.b16 %v765, %v761
      %v958 = vpack.c.b16 %v766, %v762
      %v959 = vpack.c.b16 %v771, %v767
      %v960 = vpack.c.b16 %v772, %v768
      %v961 = vpack.c.b16 %v773, %v769
      %v962 = vpack.c.b16 %v774, %v770
      %v963 = vpack.c.b16 %v779, %v775
      %v964 = vpack.c.b16 %v780, %v776
      %v965 = vpack.c.b16 %v781, %v777
      %v966 = vpack.c.b16 %v782, %v778
      %v967 = vpack.c.b16 %v787, %v783
      %v968 = vpack.c.b16 %v788, %v784
      %v969 = vpack.c.b16 %v789, %v785
      %v970 = vpack.c.b16 %v790, %v786
      %v971 = vpack.c.b16 %v795, %v791
      %v972 = vpack.c.b16 %v796, %v792
      %v973 = vpack.c.b16 %v797, %v793
      %v974 = vpack.c.b16 %v798, %v794
      %v975 = vpack.c.b16 %v803, %v799
      %v976 = vpack.c.b16 %v804, %v800
      %v977 = vpack.c.b16 %v805, %v801
      %v978 = vpack.c.b16 %v806, %v802
      %v979 = vpack.c.b16 %v811, %v807
      %v980 = vpack.c.b16 %v812, %v808
      %v981 = vpack.c.b16 %v813, %v809
      %v982 = vpack.c.b16 %v814, %v810
      %v983 = vpack.c.b16 %v819, %v815
      %v984 = vpack.c.b16 %v820, %v816
      %v985 = vpack.c.b16 %v821, %v817
      %v986 = vpack.c.b16 %v822, %v818
      %v987 = vpack.c.b16 %v827, %v823
      %v988 = vpack.c.b16 %v828, %v824
      %v989 = vpack.c.b16 %v829, %v825
      %v990 = vpack.c.b16 %v830, %v826
      %v991 = vpack.c.b16 %v835, %v831
      %v992 = vpack.c.b16 %v836, %v832
      %v993 = vpack.c.b16 %v837, %v833
      %v994 = vpack.c.b16 %v838, %v834
      %v995 = vpack.c.b16 %v843, %v839
      %v996 = vpack.c.b16 %v844, %v840
      %v997 = vpack.c.b16 %v845, %v841
      %v998 = vpack.c.b16 %v846, %v842
      %v999 = vpack.c.b16 %v851, %v847
      %v1000 = vpack.c.b16 %v852, %v848
      %v1001 = vpack.c.b16 %v853, %v849
      %v1002 = vpack.c.b16 %v854, %v850
      %v1003 = vpack.c.b16 %v859, %v855
      %v1004 = vpack.c.b16 %v860, %v856
      %v1005 = vpack.c.b16 %v861, %v857
      %v1006 = vpack.c.b16 %v862, %v858
      %v1007 = vpack.c.b16 %v867, %v863
      %v1008 = vpack.c.b16 %v868, %v864
      %v1009 = vpack.c.b16 %v869, %v865
      %v1010 = vpack.c.b16 %v870, %v866
      %v1011 = vpack.c.b16 %v875, %v871
      %v1012 = vpack.c.b16 %v876, %v872
      %v1013 = vpack.c.b16 %v877, %v873
      %v1014 = vpack.c.b16 %v878, %v874
      %v1015 = vpack.c.b16 %v883, %v879
      %v1016 = vpack.c.b16 %v884, %v880
      %v1017 = vpack.c.b16 %v885, %v881
      %v1018 = vpack.c.b16 %v886, %v882
      %v1019 = vpack.c.b16 %v891, %v887
      %v1020 = vpack.c.b16 %v892, %v888
      %v1021 = vpack.c.b16 %v893, %v889
      %v1022 = vpack.c.b16 %v894, %v890
      %1151 = vmatprep.subr.bf16.mxu0 0
      %1152 = vmatpush1.bf16.msra.mxu0 %v479
      %1153 = vmatprep.subr.bf16.mxu0 0
      %1154 = vmatpush1.bf16.msra.mxu0 %v480
      %1155 = vmatprep.subr.bf16.mxu0 0
      %1156 = vmatpush1.bf16.msra.mxu0 %v481
      %1157 = vmatprep.subr.bf16.mxu0 0
      %1158 = vmatpush1.bf16.msra.mxu0 %v482
      %1159 = vmatprep.subr.bf16.mxu0 0
      %1160 = vmatpush1.bf16.msra.mxu0 %v483
      %1161 = vmatprep.subr.bf16.mxu0 0
      %1162 = vmatpush1.bf16.msra.mxu0 %v484
      %1163 = vmatprep.subr.bf16.mxu0 0
      %1164 = vmatpush1.bf16.msra.mxu0 %v485
      %1165 = vmatprep.subr.bf16.mxu0 0
      %1166 = vmatpush1.bf16.msra.mxu0 %v486
      %1167 = vmatprep.subr.bf16.mxu0 0
      %1168 = vmatpush1.bf16.msra.mxu0 %v487
      %1169 = vmatprep.subr.bf16.mxu0 0
      %1170 = vmatpush1.bf16.msra.mxu0 %v488
      %1171 = vmatprep.subr.bf16.mxu0 0
      %1172 = vmatpush1.bf16.msra.mxu0 %v489
      %1173 = vmatprep.subr.bf16.mxu0 0
      %1174 = vmatpush1.bf16.msra.mxu0 %v490
      %1175 = vmatprep.subr.bf16.mxu0 0
      %1176 = vmatpush1.bf16.msra.mxu0 %v491
      %1177 = vmatprep.subr.bf16.mxu0 0
      %1178 = vmatpush1.bf16.msra.mxu0 %v492
      %1179 = vmatprep.subr.bf16.mxu0 0
      %1180 = vmatpush1.bf16.msra.mxu0 %v493
      %1181 = vmatprep.subr.bf16.mxu0 0
      %1182 = vmatpush1.bf16.msra.mxu0 %v494
      %1183 = vmatprep.mubr.bf16.mxu0 %v896
      %1184 = vmatmul.mubr.bf16.gmra.mrb[0].mxu0 %v895
      %v1185 = vpop.f32.mrb[0].mxu0
      %v1186 = vadd.f32 0.0, %v1185
      %v1187 = vpop.f32.mrb[0].mxu0
      %v1188 = vpop.f32.mrb[0].mxu0
      %v1189 = vadd.f32 0.0, %v1188
      %v1190 = vpop.f32.mrb[0].mxu0
      %1191 = vmatprep.mubr.bf16.mxu0 %v900
      %1192 = vmatmul.mubr.bf16.gmra.mrb[0].mxu0 %v899
      %v1193 = vpop.f32.mrb[0].mxu0
      %v1194 = vadd.f32 0.0, %v1193
      %v1195 = vpop.f32.mrb[0].mxu0
      %v1196 = vpop.f32.mrb[0].mxu0
      %v1197 = vadd.f32 0.0, %v1196
      %v1198 = vpop.f32.mrb[0].mxu0
      %1199 = vmatprep.mubr.bf16.mxu0 %v904
      %1200 = vmatmul.mubr.bf16.gmra.mrb[0].mxu0 %v903
      %v1201 = vpop.f32.mrb[0].mxu0
      %v1202 = vadd.f32 0.0, %v1201
      %v1203 = vpop.f32.mrb[0].mxu0
      %v1204 = vpop.f32.mrb[0].mxu0
      %v1205 = vadd.f32 0.0, %v1204
      %v1206 = vpop.f32.mrb[0].mxu0
      %1207 = vmatprep.mubr.bf16.mxu0 %v908
      %1208 = vmatmul.mubr.bf16.gmra.mrb[0].mxu0 %v907
      %v1209 = vpop.f32.mrb[0].mxu0
      %v1210 = vadd.f32 0.0, %v1209
      %v1211 = vpop.f32.mrb[0].mxu0
      %v1212 = vpop.f32.mrb[0].mxu0
      %v1213 = vadd.f32 0.0, %v1212
      %v1214 = vpop.f32.mrb[0].mxu0
      %1215 = vmatprep.mubr.bf16.mxu0 %v912
      %1216 = vmatmul.mubr.bf16.gmra.mrb[0].mxu0 %v911
      %v1217 = vpop.f32.mrb[0].mxu0
      %v1218 = vadd.f32 0.0, %v1217
      %v1219 = vpop.f32.mrb[0].mxu0
      %v1220 = vpop.f32.mrb[0].mxu0
      %v1221 = vadd.f32 0.0, %v1220
      %v1222 = vpop.f32.mrb[0].mxu0
      %1223 = vmatprep.mubr.bf16.mxu0 %v916
      %1224 = vmatmul.mubr.bf16.gmra.mrb[0].mxu0 %v915
      %v1225 = vpop.f32.mrb[0].mxu0
      %v1226 = vadd.f32 0.0, %v1225
      %v1227 = vpop.f32.mrb[0].mxu0
      %v1228 = vpop.f32.mrb[0].mxu0
      %v1229 = vadd.f32 0.0, %v1228
      %v1230 = vpop.f32.mrb[0].mxu0
      %1231 = vmatprep.mubr.bf16.mxu0 %v920
      %1232 = vmatmul.mubr.bf16.gmra.mrb[0].mxu0 %v919
      %v1233 = vpop.f32.mrb[0].mxu0
      %v1234 = vadd.f32 0.0, %v1233
      %v1235 = vpop.f32.mrb[0].mxu0
      %v1236 = vpop.f32.mrb[0].mxu0
      %v1237 = vadd.f32 0.0, %v1236
      %v1238 = vpop.f32.mrb[0].mxu0
      %1239 = vmatprep.mubr.bf16.mxu0 %v924
      %1240 = vmatmul.mubr.bf16.gmra.mrb[0].mxu0 %v923
      %v1241 = vpop.f32.mrb[0].mxu0
      %v1242 = vadd.f32 0.0, %v1241
      %v1243 = vpop.f32.mrb[0].mxu0
      %v1244 = vpop.f32.mrb[0].mxu0
      %v1245 = vadd.f32 0.0, %v1244
      %v1246 = vpop.f32.mrb[0].mxu0
      %1247 = vmatprep.mubr.bf16.mxu0 %v928
      %1248 = vmatmul.mubr.bf16.gmra.mrb[0].mxu0 %v927
      %v1249 = vpop.f32.mrb[0].mxu0
      %v1250 = vadd.f32 0.0, %v1249
      %v1251 = vpop.f32.mrb[0].mxu0
      %v1252 = vpop.f32.mrb[0].mxu0
      %v1253 = vadd.f32 0.0, %v1252
      %v1254 = vpop.f32.mrb[0].mxu0
      %1255 = vmatprep.mubr.bf16.mxu0 %v932
      %1256 = vmatmul.mubr.bf16.gmra.mrb[0].mxu0 %v931
      %v1257 = vpop.f32.mrb[0].mxu0
      %v1258 = vadd.f32 0.0, %v1257
      %v1259 = vpop.f32.mrb[0].mxu0
      %v1260 = vpop.f32.mrb[0].mxu0
      %v1261 = vadd.f32 0.0, %v1260
      %v1262 = vpop.f32.mrb[0].mxu0
      %1263 = vmatprep.mubr.bf16.mxu0 %v936
      %1264 = vmatmul.mubr.bf16.gmra.mrb[0].mxu0 %v935
      %v1265 = vpop.f32.mrb[0].mxu0
      %v1266 = vadd.f32 0.0, %v1265
      %v1267 = vpop.f32.mrb[0].mxu0
      %v1268 = vpop.f32.mrb[0].mxu0
      %v1269 = vadd.f32 0.0, %v1268
      %v1270 = vpop.f32.mrb[0].mxu0
      %1271 = vmatprep.mubr.bf16.mxu0 %v940
      %1272 = vmatmul.mubr.bf16.gmra.mrb[0].mxu0 %v939
      %v1273 = vpop.f32.mrb[0].mxu0
      %v1274 = vadd.f32 0.0, %v1273
      %v1275 = vpop.f32.mrb[0].mxu0
      %v1276 = vpop.f32.mrb[0].mxu0
      %v1277 = vadd.f32 0.0, %v1276
      %v1278 = vpop.f32.mrb[0].mxu0
      %1279 = vmatprep.mubr.bf16.mxu0 %v944
      %1280 = vmatmul.mubr.bf16.gmra.mrb[0].mxu0 %v943
      %v1281 = vpop.f32.mrb[0].mxu0
      %v1282 = vadd.f32 0.0, %v1281
      %v1283 = vpop.f32.mrb[0].mxu0
      %v1284 = vpop.f32.mrb[0].mxu0
      %v1285 = vadd.f32 0.0, %v1284
      %v1286 = vpop.f32.mrb[0].mxu0
      %1287 = vmatprep.mubr.bf16.mxu0 %v948
      %1288 = vmatmul.mubr.bf16.gmra.mrb[0].mxu0 %v947
      %v1289 = vpop.f32.mrb[0].mxu0
      %v1290 = vadd.f32 0.0, %v1289
      %v1291 = vpop.f32.mrb[0].mxu0
      %v1292 = vpop.f32.mrb[0].mxu0
      %v1293 = vadd.f32 0.0, %v1292
      %v1294 = vpop.f32.mrb[0].mxu0
      %1295 = vmatprep.mubr.bf16.mxu0 %v952
      %1296 = vmatmul.mubr.bf16.gmra.mrb[0].mxu0 %v951
      %v1297 = vpop.f32.mrb[0].mxu0
      %v1298 = vadd.f32 0.0, %v1297
      %v1299 = vpop.f32.mrb[0].mxu0
      %v1300 = vpop.f32.mrb[0].mxu0
      %v1301 = vadd.f32 0.0, %v1300
      %v1302 = vpop.f32.mrb[0].mxu0
      %1303 = vmatprep.mubr.bf16.mxu0 %v956
      %1304 = vmatmul.mubr.bf16.gmra.mrb[0].mxu0 %v955
      %v1305 = vpop.f32.mrb[0].mxu0
      %v1306 = vadd.f32 0.0, %v1305
      %v1307 = vpop.f32.mrb[0].mxu0
      %v1308 = vpop.f32.mrb[0].mxu0
      %v1309 = vadd.f32 0.0, %v1308
      %v1310 = vpop.f32.mrb[0].mxu0
      %1311 = vmatprep.mubr.bf16.mxu0 %v960
      %1312 = vmatmul.mubr.bf16.gmra.mrb[0].mxu0 %v959
      %v1313 = vpop.f32.mrb[0].mxu0
      %v1314 = vadd.f32 0.0, %v1313
      %v1315 = vpop.f32.mrb[0].mxu0
      %v1316 = vpop.f32.mrb[0].mxu0
      %v1317 = vadd.f32 0.0, %v1316
      %v1318 = vpop.f32.mrb[0].mxu0
      %1319 = vmatprep.mubr.bf16.mxu0 %v964
      %1320 = vmatmul.mubr.bf16.gmra.mrb[0].mxu0 %v963
      %v1321 = vpop.f32.mrb[0].mxu0
      %v1322 = vadd.f32 0.0, %v1321
      %v1323 = vpop.f32.mrb[0].mxu0
      %v1324 = vpop.f32.mrb[0].mxu0
      %v1325 = vadd.f32 0.0, %v1324
      %v1326 = vpop.f32.mrb[0].mxu0
      %1327 = vmatprep.mubr.bf16.mxu0 %v968
      %1328 = vmatmul.mubr.bf16.gmra.mrb[0].mxu0 %v967
      %v1329 = vpop.f32.mrb[0].mxu0
      %v1330 = vadd.f32 0.0, %v1329
      %v1331 = vpop.f32.mrb[0].mxu0
      %v1332 = vpop.f32.mrb[0].mxu0
      %v1333 = vadd.f32 0.0, %v1332
      %v1334 = vpop.f32.mrb[0].mxu0
      %1335 = vmatprep.mubr.bf16.mxu0 %v972
      %1336 = vmatmul.mubr.bf16.gmra.mrb[0].mxu0 %v971
      %v1337 = vpop.f32.mrb[0].mxu0
      %v1338 = vadd.f32 0.0, %v1337
      %v1339 = vpop.f32.mrb[0].mxu0
      %v1340 = vpop.f32.mrb[0].mxu0
      %v1341 = vadd.f32 0.0, %v1340
      %v1342 = vpop.f32.mrb[0].mxu0
      %1343 = vmatprep.mubr.bf16.mxu0 %v976
      %1344 = vmatmul.mubr.bf16.gmra.mrb[0].mxu0 %v975
      %v1345 = vpop.f32.mrb[0].mxu0
      %v1346 = vadd.f32 0.0, %v1345
      %v1347 = vpop.f32.mrb[0].mxu0
      %v1348 = vpop.f32.mrb[0].mxu0
      %v1349 = vadd.f32 0.0, %v1348
      %v1350 = vpop.f32.mrb[0].mxu0
      %1351 = vmatprep.mubr.bf16.mxu0 %v980
      %1352 = vmatmul.mubr.bf16.gmra.mrb[0].mxu0 %v979
      %v1353 = vpop.f32.mrb[0].mxu0
      %v1354 = vadd.f32 0.0, %v1353
      %v1355 = vpop.f32.mrb[0].mxu0
      %v1356 = vpop.f32.mrb[0].mxu0
      %v1357 = vadd.f32 0.0, %v1356
      %v1358 = vpop.f32.mrb[0].mxu0
      %1359 = vmatprep.mubr.bf16.mxu0 %v984
      %1360 = vmatmul.mubr.bf16.gmra.mrb[0].mxu0 %v983
      %v1361 = vpop.f32.mrb[0].mxu0
      %v1362 = vadd.f32 0.0, %v1361
      %v1363 = vpop.f32.mrb[0].mxu0
      %v1364 = vpop.f32.mrb[0].mxu0
      %v1365 = vadd.f32 0.0, %v1364
      %v1366 = vpop.f32.mrb[0].mxu0
      %1367 = vmatprep.mubr.bf16.mxu0 %v988
      %1368 = vmatmul.mubr.bf16.gmra.mrb[0].mxu0 %v987
      %v1369 = vpop.f32.mrb[0].mxu0
      %v1370 = vadd.f32 0.0, %v1369
      %v1371 = vpop.f32.mrb[0].mxu0
      %v1372 = vpop.f32.mrb[0].mxu0
      %v1373 = vadd.f32 0.0, %v1372
      %v1374 = vpop.f32.mrb[0].mxu0
      %1375 = vmatprep.mubr.bf16.mxu0 %v992
      %1376 = vmatmul.mubr.bf16.gmra.mrb[0].mxu0 %v991
      %v1377 = vpop.f32.mrb[0].mxu0
      %v1378 = vadd.f32 0.0, %v1377
      %v1379 = vpop.f32.mrb[0].mxu0
      %v1380 = vpop.f32.mrb[0].mxu0
      %v1381 = vadd.f32 0.0, %v1380
      %v1382 = vpop.f32.mrb[0].mxu0
      %1383 = vmatprep.mubr.bf16.mxu0 %v996
      %1384 = vmatmul.mubr.bf16.gmra.mrb[0].mxu0 %v995
      %v1385 = vpop.f32.mrb[0].mxu0
      %v1386 = vadd.f32 0.0, %v1385
      %v1387 = vpop.f32.mrb[0].mxu0
      %v1388 = vpop.f32.mrb[0].mxu0
      %v1389 = vadd.f32 0.0, %v1388
      %v1390 = vpop.f32.mrb[0].mxu0
      %1391 = vmatprep.mubr.bf16.mxu0 %v1000
      %1392 = vmatmul.mubr.bf16.gmra.mrb[0].mxu0 %v999
      %v1393 = vpop.f32.mrb[0].mxu0
      %v1394 = vadd.f32 0.0, %v1393
      %v1395 = vpop.f32.mrb[0].mxu0
      %v1396 = vpop.f32.mrb[0].mxu0
      %v1397 = vadd.f32 0.0, %v1396
      %v1398 = vpop.f32.mrb[0].mxu0
      %1399 = vmatprep.mubr.bf16.mxu0 %v1004
      %1400 = vmatmul.mubr.bf16.gmra.mrb[0].mxu0 %v1003
      %v1401 = vpop.f32.mrb[0].mxu0
      %v1402 = vadd.f32 0.0, %v1401
      %v1403 = vpop.f32.mrb[0].mxu0
      %v1404 = vpop.f32.mrb[0].mxu0
      %v1405 = vadd.f32 0.0, %v1404
      %v1406 = vpop.f32.mrb[0].mxu0
      %1407 = vmatprep.mubr.bf16.mxu0 %v1008
      %1408 = vmatmul.mubr.bf16.gmra.mrb[0].mxu0 %v1007
      %v1409 = vpop.f32.mrb[0].mxu0
      %v1410 = vadd.f32 0.0, %v1409
      %v1411 = vpop.f32.mrb[0].mxu0
      %v1412 = vpop.f32.mrb[0].mxu0
      %v1413 = vadd.f32 0.0, %v1412
      %v1414 = vpop.f32.mrb[0].mxu0
      %1415 = vmatprep.mubr.bf16.mxu0 %v1012
      %1416 = vmatmul.mubr.bf16.gmra.mrb[0].mxu0 %v1011
      %v1417 = vpop.f32.mrb[0].mxu0
      %v1418 = vadd.f32 0.0, %v1417
      %v1419 = vpop.f32.mrb[0].mxu0
      %v1420 = vpop.f32.mrb[0].mxu0
      %v1421 = vadd.f32 0.0, %v1420
      %v1422 = vpop.f32.mrb[0].mxu0
      %1423 = vmatprep.mubr.bf16.mxu0 %v1016
      %1424 = vmatmul.mubr.bf16.gmra.mrb[0].mxu0 %v1015
      %v1425 = vpop.f32.mrb[0].mxu0
      %v1426 = vadd.f32 0.0, %v1425
      %v1427 = vpop.f32.mrb[0].mxu0
      %v1428 = vpop.f32.mrb[0].mxu0
      %v1429 = vadd.f32 0.0, %v1428
      %v1430 = vpop.f32.mrb[0].mxu0
      %1431 = vmatprep.mubr.bf16.mxu0 %v1020
      %1432 = vmatmul.mubr.bf16.gmra.mrb[0].mxu0 %v1019
      %v1433 = vpop.f32.mrb[0].mxu0
      %v1434 = vadd.f32 0.0, %v1433
      %v1435 = vpop.f32.mrb[0].mxu0
      %v1436 = vpop.f32.mrb[0].mxu0
      %v1437 = vadd.f32 0.0, %v1436
      %v1438 = vpop.f32.mrb[0].mxu0
      %1439 = vdwg.mxu0
      %1440 = vmatprep.subr.bf16.mxu0 0
      %1441 = vmatpush1.bf16.msra.mxu0 %v495
      %1442 = vmatprep.subr.bf16.mxu0 0
      %1443 = vmatpush1.bf16.msra.mxu0 %v496
      %1444 = vmatprep.subr.bf16.mxu0 0
      %1445 = vmatpush1.bf16.msra.mxu0 %v497
      %1446 = vmatprep.subr.bf16.mxu0 0
      %1447 = vmatpush1.bf16.msra.mxu0 %v498
      %1448 = vmatprep.subr.bf16.mxu0 0
      %1449 = vmatpush1.bf16.msra.mxu0 %v499
      %1450 = vmatprep.subr.bf16.mxu0 0
      %1451 = vmatpush1.bf16.msra.mxu0 %v500
      %1452 = vmatprep.subr.bf16.mxu0 0
      %1453 = vmatpush1.bf16.msra.mxu0 %v501
      %1454 = vmatprep.subr.bf16.mxu0 0
      %1455 = vmatpush1.bf16.msra.mxu0 %v502
      %1456 = vmatprep.subr.bf16.mxu0 0
      %1457 = vmatpush1.bf16.msra.mxu0 %v503
      %1458 = vmatprep.subr.bf16.mxu0 0
      %1459 = vmatpush1.bf16.msra.mxu0 %v504
      %1460 = vmatprep.subr.bf16.mxu0 0
      %1461 = vmatpush1.bf16.msra.mxu0 %v505
      %1462 = vmatprep.subr.bf16.mxu0 0
      %1463 = vmatpush1.bf16.msra.mxu0 %v506
      %1464 = vmatprep.subr.bf16.mxu0 0
      %1465 = vmatpush1.bf16.msra.mxu0 %v507
      %1466 = vmatprep.subr.bf16.mxu0 0
      %1467 = vmatpush1.bf16.msra.mxu0 %v508
      %1468 = vmatprep.subr.bf16.mxu0 0
      %1469 = vmatpush1.bf16.msra.mxu0 %v509
      %1470 = vmatprep.subr.bf16.mxu0 0
      %1471 = vmatpush1.bf16.msra.mxu0 %v510
      %1472 = vmatprep.mubr.bf16.mxu0 %v898
      %1473 = vmatmul.mubr.bf16.gmra.mrb[0].mxu0 %v897
      %v1474 = vpop.f32.mrb[0].mxu0
      %v1475 = vadd.f32 %v1186, %v1474
      %v1476 = vpop.f32.mrb[0].mxu0
      %v1477 = vpop.f32.mrb[0].mxu0
      %v1478 = vadd.f32 %v1189, %v1477
      %v1479 = vpop.f32.mrb[0].mxu0
      %1480 = vmatprep.mubr.bf16.mxu0 %v902
      %1481 = vmatmul.mubr.bf16.gmra.mrb[0].mxu0 %v901
      %v1482 = vpop.f32.mrb[0].mxu0
      %v1483 = vadd.f32 %v1194, %v1482
      %v1484 = vpop.f32.mrb[0].mxu0
      %v1485 = vpop.f32.mrb[0].mxu0
      %v1486 = vadd.f32 %v1197, %v1485
      %v1487 = vpop.f32.mrb[0].mxu0
      %1488 = vmatprep.mubr.bf16.mxu0 %v906
      %1489 = vmatmul.mubr.bf16.gmra.mrb[0].mxu0 %v905
      %v1490 = vpop.f32.mrb[0].mxu0
      %v1491 = vadd.f32 %v1202, %v1490
      %v1492 = vpop.f32.mrb[0].mxu0
      %v1493 = vpop.f32.mrb[0].mxu0
      %v1494 = vadd.f32 %v1205, %v1493
      %v1495 = vpop.f32.mrb[0].mxu0
      %1496 = vmatprep.mubr.bf16.mxu0 %v910
      %1497 = vmatmul.mubr.bf16.gmra.mrb[0].mxu0 %v909
      %v1498 = vpop.f32.mrb[0].mxu0
      %v1499 = vadd.f32 %v1210, %v1498
      %v1500 = vpop.f32.mrb[0].mxu0
      %v1501 = vpop.f32.mrb[0].mxu0
      %v1502 = vadd.f32 %v1213, %v1501
      %v1503 = vpop.f32.mrb[0].mxu0
      %1504 = vmatprep.mubr.bf16.mxu0 %v914
      %1505 = vmatmul.mubr.bf16.gmra.mrb[0].mxu0 %v913
      %v1506 = vpop.f32.mrb[0].mxu0
      %v1507 = vadd.f32 %v1218, %v1506
      %v1508 = vpop.f32.mrb[0].mxu0
      %v1509 = vpop.f32.mrb[0].mxu0
      %v1510 = vadd.f32 %v1221, %v1509
      %v1511 = vpop.f32.mrb[0].mxu0
      %1512 = vmatprep.mubr.bf16.mxu0 %v918
      %1513 = vmatmul.mubr.bf16.gmra.mrb[0].mxu0 %v917
      %v1514 = vpop.f32.mrb[0].mxu0
      %v1515 = vadd.f32 %v1226, %v1514
      %v1516 = vpop.f32.mrb[0].mxu0
      %v1517 = vpop.f32.mrb[0].mxu0
      %v1518 = vadd.f32 %v1229, %v1517
      %v1519 = vpop.f32.mrb[0].mxu0
      %1520 = vmatprep.mubr.bf16.mxu0 %v922
      %1521 = vmatmul.mubr.bf16.gmra.mrb[0].mxu0 %v921
      %v1522 = vpop.f32.mrb[0].mxu0
      %v1523 = vadd.f32 %v1234, %v1522
      %v1524 = vpop.f32.mrb[0].mxu0
      %v1525 = vpop.f32.mrb[0].mxu0
      %v1526 = vadd.f32 %v1237, %v1525
      %v1527 = vpop.f32.mrb[0].mxu0
      %1528 = vmatprep.mubr.bf16.mxu0 %v926
      %1529 = vmatmul.mubr.bf16.gmra.mrb[0].mxu0 %v925
      %v1530 = vpop.f32.mrb[0].mxu0
      %v1531 = vadd.f32 %v1242, %v1530
      %v1532 = vpop.f32.mrb[0].mxu0
      %v1533 = vpop.f32.mrb[0].mxu0
      %v1534 = vadd.f32 %v1245, %v1533
      %v1535 = vpop.f32.mrb[0].mxu0
      %1536 = vmatprep.mubr.bf16.mxu0 %v930
      %1537 = vmatmul.mubr.bf16.gmra.mrb[0].mxu0 %v929
      %v1538 = vpop.f32.mrb[0].mxu0
      %v1539 = vadd.f32 %v1250, %v1538
      %v1540 = vpop.f32.mrb[0].mxu0
      %v1541 = vpop.f32.mrb[0].mxu0
      %v1542 = vadd.f32 %v1253, %v1541
      %v1543 = vpop.f32.mrb[0].mxu0
      %1544 = vmatprep.mubr.bf16.mxu0 %v934
      %1545 = vmatmul.mubr.bf16.gmra.mrb[0].mxu0 %v933
      %v1546 = vpop.f32.mrb[0].mxu0
      %v1547 = vadd.f32 %v1258, %v1546
      %v1548 = vpop.f32.mrb[0].mxu0
      %v1549 = vpop.f32.mrb[0].mxu0
      %v1550 = vadd.f32 %v1261, %v1549
      %v1551 = vpop.f32.mrb[0].mxu0
      %1552 = vmatprep.mubr.bf16.mxu0 %v938
      %1553 = vmatmul.mubr.bf16.gmra.mrb[0].mxu0 %v937
      %v1554 = vpop.f32.mrb[0].mxu0
      %v1555 = vadd.f32 %v1266, %v1554
      %v1556 = vpop.f32.mrb[0].mxu0
      %v1557 = vpop.f32.mrb[0].mxu0
      %v1558 = vadd.f32 %v1269, %v1557
      %v1559 = vpop.f32.mrb[0].mxu0
      %1560 = vmatprep.mubr.bf16.mxu0 %v942
      %1561 = vmatmul.mubr.bf16.gmra.mrb[0].mxu0 %v941
      %v1562 = vpop.f32.mrb[0].mxu0
      %v1563 = vadd.f32 %v1274, %v1562
      %v1564 = vpop.f32.mrb[0].mxu0
      %v1565 = vpop.f32.mrb[0].mxu0
      %v1566 = vadd.f32 %v1277, %v1565
      %v1567 = vpop.f32.mrb[0].mxu0
      %1568 = vmatprep.mubr.bf16.mxu0 %v946
      %1569 = vmatmul.mubr.bf16.gmra.mrb[0].mxu0 %v945
      %v1570 = vpop.f32.mrb[0].mxu0
      %v1571 = vadd.f32 %v1282, %v1570
      %v1572 = vpop.f32.mrb[0].mxu0
      %v1573 = vpop.f32.mrb[0].mxu0
      %v1574 = vadd.f32 %v1285, %v1573
      %v1575 = vpop.f32.mrb[0].mxu0
      %1576 = vmatprep.mubr.bf16.mxu0 %v950
      %1577 = vmatmul.mubr.bf16.gmra.mrb[0].mxu0 %v949
      %v1578 = vpop.f32.mrb[0].mxu0
      %v1579 = vadd.f32 %v1290, %v1578
      %v1580 = vpop.f32.mrb[0].mxu0
      %v1581 = vpop.f32.mrb[0].mxu0
      %v1582 = vadd.f32 %v1293, %v1581
      %v1583 = vpop.f32.mrb[0].mxu0
      %1584 = vmatprep.mubr.bf16.mxu0 %v954
      %1585 = vmatmul.mubr.bf16.gmra.mrb[0].mxu0 %v953
      %v1586 = vpop.f32.mrb[0].mxu0
      %v1587 = vadd.f32 %v1298, %v1586
      %v1588 = vpop.f32.mrb[0].mxu0
      %v1589 = vpop.f32.mrb[0].mxu0
      %v1590 = vadd.f32 %v1301, %v1589
      %v1591 = vpop.f32.mrb[0].mxu0
      %1592 = vmatprep.mubr.bf16.mxu0 %v958
      %1593 = vmatmul.mubr.bf16.gmra.mrb[0].mxu0 %v957
      %v1594 = vpop.f32.mrb[0].mxu0
      %v1595 = vadd.f32 %v1306, %v1594
      %v1596 = vpop.f32.mrb[0].mxu0
      %v1597 = vpop.f32.mrb[0].mxu0
      %v1598 = vadd.f32 %v1309, %v1597
      %v1599 = vpop.f32.mrb[0].mxu0
      %1600 = vmatprep.mubr.bf16.mxu0 %v962
      %1601 = vmatmul.mubr.bf16.gmra.mrb[0].mxu0 %v961
      %v1602 = vpop.f32.mrb[0].mxu0
      %v1603 = vadd.f32 %v1314, %v1602
      %v1604 = vpop.f32.mrb[0].mxu0
      %v1605 = vpop.f32.mrb[0].mxu0
      %v1606 = vadd.f32 %v1317, %v1605
      %v1607 = vpop.f32.mrb[0].mxu0
      %1608 = vmatprep.mubr.bf16.mxu0 %v966
      %1609 = vmatmul.mubr.bf16.gmra.mrb[0].mxu0 %v965
      %v1610 = vpop.f32.mrb[0].mxu0
      %v1611 = vadd.f32 %v1322, %v1610
      %v1612 = vpop.f32.mrb[0].mxu0
      %v1613 = vpop.f32.mrb[0].mxu0
      %v1614 = vadd.f32 %v1325, %v1613
      %v1615 = vpop.f32.mrb[0].mxu0
      %1616 = vmatprep.mubr.bf16.mxu0 %v970
      %1617 = vmatmul.mubr.bf16.gmra.mrb[0].mxu0 %v969
      %v1618 = vpop.f32.mrb[0].mxu0
      %v1619 = vadd.f32 %v1330, %v1618
      %v1620 = vpop.f32.mrb[0].mxu0
      %v1621 = vpop.f32.mrb[0].mxu0
      %v1622 = vadd.f32 %v1333, %v1621
      %v1623 = vpop.f32.mrb[0].mxu0
      %1624 = vmatprep.mubr.bf16.mxu0 %v974
      %1625 = vmatmul.mubr.bf16.gmra.mrb[0].mxu0 %v973
      %v1626 = vpop.f32.mrb[0].mxu0
      %v1627 = vadd.f32 %v1338, %v1626
      %v1628 = vpop.f32.mrb[0].mxu0
      %v1629 = vpop.f32.mrb[0].mxu0
      %v1630 = vadd.f32 %v1341, %v1629
      %v1631 = vpop.f32.mrb[0].mxu0
      %1632 = vmatprep.mubr.bf16.mxu0 %v978
      %1633 = vmatmul.mubr.bf16.gmra.mrb[0].mxu0 %v977
      %v1634 = vpop.f32.mrb[0].mxu0
      %v1635 = vadd.f32 %v1346, %v1634
      %v1636 = vpop.f32.mrb[0].mxu0
      %v1637 = vpop.f32.mrb[0].mxu0
      %v1638 = vadd.f32 %v1349, %v1637
      %v1639 = vpop.f32.mrb[0].mxu0
      %1640 = vmatprep.mubr.bf16.mxu0 %v982
      %1641 = vmatmul.mubr.bf16.gmra.mrb[0].mxu0 %v981
      %v1642 = vpop.f32.mrb[0].mxu0
      %v1643 = vadd.f32 %v1354, %v1642
      %v1644 = vpop.f32.mrb[0].mxu0
      %v1645 = vpop.f32.mrb[0].mxu0
      %v1646 = vadd.f32 %v1357, %v1645
      %v1647 = vpop.f32.mrb[0].mxu0
      %1648 = vmatprep.mubr.bf16.mxu0 %v986
      %1649 = vmatmul.mubr.bf16.gmra.mrb[0].mxu0 %v985
      %v1650 = vpop.f32.mrb[0].mxu0
      %v1651 = vadd.f32 %v1362, %v1650
      %v1652 = vpop.f32.mrb[0].mxu0
      %v1653 = vpop.f32.mrb[0].mxu0
      %v1654 = vadd.f32 %v1365, %v1653
      %v1655 = vpop.f32.mrb[0].mxu0
      %1656 = vmatprep.mubr.bf16.mxu0 %v990
      %1657 = vmatmul.mubr.bf16.gmra.mrb[0].mxu0 %v989
      %v1658 = vpop.f32.mrb[0].mxu0
      %v1659 = vadd.f32 %v1370, %v1658
      %v1660 = vpop.f32.mrb[0].mxu0
      %v1661 = vpop.f32.mrb[0].mxu0
      %v1662 = vadd.f32 %v1373, %v1661
      %v1663 = vpop.f32.mrb[0].mxu0
      %1664 = vmatprep.mubr.bf16.mxu0 %v994
      %1665 = vmatmul.mubr.bf16.gmra.mrb[0].mxu0 %v993
      %v1666 = vpop.f32.mrb[0].mxu0
      %v1667 = vadd.f32 %v1378, %v1666
      %v1668 = vpop.f32.mrb[0].mxu0
      %v1669 = vpop.f32.mrb[0].mxu0
      %v1670 = vadd.f32 %v1381, %v1669
      %v1671 = vpop.f32.mrb[0].mxu0
      %1672 = vmatprep.mubr.bf16.mxu0 %v998
      %1673 = vmatmul.mubr.bf16.gmra.mrb[0].mxu0 %v997
      %v1674 = vpop.f32.mrb[0].mxu0
      %v1675 = vadd.f32 %v1386, %v1674
      %v1676 = vpop.f32.mrb[0].mxu0
      %v1677 = vpop.f32.mrb[0].mxu0
      %v1678 = vadd.f32 %v1389, %v1677
      %v1679 = vpop.f32.mrb[0].mxu0
      %1680 = vmatprep.mubr.bf16.mxu0 %v1002
      %1681 = vmatmul.mubr.bf16.gmra.mrb[0].mxu0 %v1001
      %v1682 = vpop.f32.mrb[0].mxu0
      %v1683 = vadd.f32 %v1394, %v1682
      %v1684 = vpop.f32.mrb[0].mxu0
      %v1685 = vpop.f32.mrb[0].mxu0
      %v1686 = vadd.f32 %v1397, %v1685
      %v1687 = vpop.f32.mrb[0].mxu0
      %1688 = vmatprep.mubr.bf16.mxu0 %v1006
      %1689 = vmatmul.mubr.bf16.gmra.mrb[0].mxu0 %v1005
      %v1690 = vpop.f32.mrb[0].mxu0
      %v1691 = vadd.f32 %v1402, %v1690
      %v1692 = vpop.f32.mrb[0].mxu0
      %v1693 = vpop.f32.mrb[0].mxu0
      %v1694 = vadd.f32 %v1405, %v1693
      %v1695 = vpop.f32.mrb[0].mxu0
      %1696 = vmatprep.mubr.bf16.mxu0 %v1010
      %1697 = vmatmul.mubr.bf16.gmra.mrb[0].mxu0 %v1009
      %v1698 = vpop.f32.mrb[0].mxu0
      %v1699 = vadd.f32 %v1410, %v1698
      %v1700 = vpop.f32.mrb[0].mxu0
      %v1701 = vpop.f32.mrb[0].mxu0
      %v1702 = vadd.f32 %v1413, %v1701
      %v1703 = vpop.f32.mrb[0].mxu0
      %1704 = vmatprep.mubr.bf16.mxu0 %v1014
      %1705 = vmatmul.mubr.bf16.gmra.mrb[0].mxu0 %v1013
      %v1706 = vpop.f32.mrb[0].mxu0
      %v1707 = vadd.f32 %v1418, %v1706
      %v1708 = vpop.f32.mrb[0].mxu0
      %v1709 = vpop.f32.mrb[0].mxu0
      %v1710 = vadd.f32 %v1421, %v1709
      %v1711 = vpop.f32.mrb[0].mxu0
      %1712 = vmatprep.mubr.bf16.mxu0 %v1018
      %1713 = vmatmul.mubr.bf16.gmra.mrb[0].mxu0 %v1017
      %v1714 = vpop.f32.mrb[0].mxu0
      %v1715 = vadd.f32 %v1426, %v1714
      %v1716 = vpop.f32.mrb[0].mxu0
      %v1717 = vpop.f32.mrb[0].mxu0
      %v1718 = vadd.f32 %v1429, %v1717
      %v1719 = vpop.f32.mrb[0].mxu0
      %1720 = vmatprep.mubr.bf16.mxu0 %v1022
      %1721 = vmatmul.mubr.bf16.gmra.mrb[0].mxu0 %v1021
      %v1722 = vpop.f32.mrb[0].mxu0
      %v1723 = vadd.f32 %v1434, %v1722
      %v1724 = vpop.f32.mrb[0].mxu0
      %v1725 = vpop.f32.mrb[0].mxu0
      %v1726 = vadd.f32 %v1437, %v1725
      %v1727 = vpop.f32.mrb[0].mxu0
      %1728 = vdwg.mxu0
      %v1729 = vpack.c.bf16 %v1478, %v1475
      %v1730 = vpack.c.bf16 %v1486, %v1483
      %v1731 = vpack.c.bf16 %v1494, %v1491
      %v1732 = vpack.c.bf16 %v1502, %v1499
      %v1733 = vpack.c.bf16 %v1510, %v1507
      %v1734 = vpack.c.bf16 %v1518, %v1515
      %v1735 = vpack.c.bf16 %v1526, %v1523
      %v1736 = vpack.c.bf16 %v1534, %v1531
      %v1737 = vpack.c.bf16 %v1542, %v1539
      %v1738 = vpack.c.bf16 %v1550, %v1547
      %v1739 = vpack.c.bf16 %v1558, %v1555
      %v1740 = vpack.c.bf16 %v1566, %v1563
      %v1741 = vpack.c.bf16 %v1574, %v1571
      %v1742 = vpack.c.bf16 %v1582, %v1579
      %v1743 = vpack.c.bf16 %v1590, %v1587
      %v1744 = vpack.c.bf16 %v1598, %v1595
      %v1745 = vpack.c.bf16 %v1606, %v1603
      %v1746 = vpack.c.bf16 %v1614, %v1611
      %v1747 = vpack.c.bf16 %v1622, %v1619
      %v1748 = vpack.c.bf16 %v1630, %v1627
      %v1749 = vpack.c.bf16 %v1638, %v1635
      %v1750 = vpack.c.bf16 %v1646, %v1643
      %v1751 = vpack.c.bf16 %v1654, %v1651
      %v1752 = vpack.c.bf16 %v1662, %v1659
      %v1753 = vpack.c.bf16 %v1670, %v1667
      %v1754 = vpack.c.bf16 %v1678, %v1675
      %v1755 = vpack.c.bf16 %v1686, %v1683
      %v1756 = vpack.c.bf16 %v1694, %v1691
      %v1757 = vpack.c.bf16 %v1702, %v1699
      %v1758 = vpack.c.bf16 %v1710, %v1707
      %v1759 = vpack.c.bf16 %v1718, %v1715
      %v1760 = vpack.c.bf16 %v1726, %v1723
      %s1761 = smul.u32 %s347, 32
      %s1762 = smul.addr %s1761, 8
      %s1763 = scalar_lea.vmem [#allocation2], %s1762
      %1764 = vst [vmem:[%s1763] sm:$0xff] %v1729
      %1765 = vst [vmem:[%s1763 + $0x8] sm:$0xff] %v1730
      %1766 = vst [vmem:[%s1763 + $0x10] sm:$0xff] %v1731
      %1767 = vst [vmem:[%s1763 + $0x18] sm:$0xff] %v1732
      %1768 = vst [vmem:[%s1763 + $0x20] sm:$0xff] %v1733
      %1769 = vst [vmem:[%s1763 + $0x28] sm:$0xff] %v1734
      %1770 = vst [vmem:[%s1763 + $0x30] sm:$0xff] %v1735
      %1771 = vst [vmem:[%s1763 + $0x38] sm:$0xff] %v1736
      %1772 = vst [vmem:[%s1763 + $0x40] sm:$0xff] %v1737
      %1773 = vst [vmem:[%s1763 + $0x48] sm:$0xff] %v1738
      %1774 = vst [vmem:[%s1763 + $0x50] sm:$0xff] %v1739
      %1775 = vst [vmem:[%s1763 + $0x58] sm:$0xff] %v1740
      %1776 = vst [vmem:[%s1763 + $0x60] sm:$0xff] %v1741
      %1777 = vst [vmem:[%s1763 + $0x68] sm:$0xff] %v1742
      %1778 = vst [vmem:[%s1763 + $0x70] sm:$0xff] %v1743
      %1779 = vst [vmem:[%s1763 + $0x78] sm:$0xff] %v1744
      %1780 = vst [vmem:[%s1763 + $0x80] sm:$0xff] %v1745
      %1781 = vst [vmem:[%s1763 + $0x88] sm:$0xff] %v1746
      %1782 = vst [vmem:[%s1763 + $0x90] sm:$0xff] %v1747
      %1783 = vst [vmem:[%s1763 + $0x98] sm:$0xff] %v1748
      %1784 = vst [vmem:[%s1763 + $0xa0] sm:$0xff] %v1749
      %1785 = vst [vmem:[%s1763 + $0xa8] sm:$0xff] %v1750
      %1786 = vst [vmem:[%s1763 + $0xb0] sm:$0xff] %v1751
      %1787 = vst [vmem:[%s1763 + $0xb8] sm:$0xff] %v1752
      %1788 = vst [vmem:[%s1763 + $0xc0] sm:$0xff] %v1753
      %1789 = vst [vmem:[%s1763 + $0xc8] sm:$0xff] %v1754
      %1790 = vst [vmem:[%s1763 + $0xd0] sm:$0xff] %v1755
      %1791 = vst [vmem:[%s1763 + $0xd8] sm:$0xff] %v1756
      %1792 = vst [vmem:[%s1763 + $0xe0] sm:$0xff] %v1757
      %1793 = vst [vmem:[%s1763 + $0xe8] sm:$0xff] %v1758
      %1794 = vst [vmem:[%s1763 + $0xf0] sm:$0xff] %v1759
      %1795 = vst [vmem:[%s1763 + $0xf8] sm:$0xff] %v1760
      %1796 = vst [vmem:[%s148] sm:$0xff] %v1475
      %1797 = vst [vmem:[%s148 + $0x8] sm:$0xff] %v1478
      %1798 = vst [vmem:[%s148 + $0x10] sm:$0xff] %v1483
      %1799 = vst [vmem:[%s148 + $0x18] sm:$0xff] %v1486
      %1800 = vst [vmem:[%s148 + $0x20] sm:$0xff] %v1491
      %1801 = vst [vmem:[%s148 + $0x28] sm:$0xff] %v1494
      %1802 = vst [vmem:[%s148 + $0x30] sm:$0xff] %v1499
      %1803 = vst [vmem:[%s148 + $0x38] sm:$0xff] %v1502
      %1804 = vst [vmem:[%s148 + $0x40] sm:$0xff] %v1507
      %1805 = vst [vmem:[%s148 + $0x48] sm:$0xff] %v1510
      %1806 = vst [vmem:[%s148 + $0x50] sm:$0xff] %v1515
      %1807 = vst [vmem:[%s148 + $0x58] sm:$0xff] %v1518
      %1808 = vst [vmem:[%s148 + $0x60] sm:$0xff] %v1523
      %1809 = vst [vmem:[%s148 + $0x68] sm:$0xff] %v1526
      %1810 = vst [vmem:[%s148 + $0x70] sm:$0xff] %v1531
      %1811 = vst [vmem:[%s148 + $0x78] sm:$0xff] %v1534
      %1812 = vst [vmem:[%s148 + $0x80] sm:$0xff] %v1539
      %1813 = vst [vmem:[%s148 + $0x88] sm:$0xff] %v1542
      %1814 = vst [vmem:[%s148 + $0x90] sm:$0xff] %v1547
      %1815 = vst [vmem:[%s148 + $0x98] sm:$0xff] %v1550
      %1816 = vst [vmem:[%s148 + $0xa0] sm:$0xff] %v1555
      %1817 = vst [vmem:[%s148 + $0xa8] sm:$0xff] %v1558
      %1818 = vst [vmem:[%s148 + $0xb0] sm:$0xff] %v1563
      %1819 = vst [vmem:[%s148 + $0xb8] sm:$0xff] %v1566
      %1820 = vst [vmem:[%s148 + $0xc0] sm:$0xff] %v1571
      %1821 = vst [vmem:[%s148 + $0xc8] sm:$0xff] %v1574
      %1822 = vst [vmem:[%s148 + $0xd0] sm:$0xff] %v1579
      %1823 = vst [vmem:[%s148 + $0xd8] sm:$0xff] %v1582
      %1824 = vst [vmem:[%s148 + $0xe0] sm:$0xff] %v1587
      %1825 = vst [vmem:[%s148 + $0xe8] sm:$0xff] %v1590
      %1826 = vst [vmem:[%s148 + $0xf0] sm:$0xff] %v1595
      %1827 = vst [vmem:[%s148 + $0xf8] sm:$0xff] %v1598
      %1828 = vst [vmem:[%s148 + $0x100] sm:$0xff] %v1603
      %1829 = vst [vmem:[%s148 + $0x108] sm:$0xff] %v1606
      %1830 = vst [vmem:[%s148 + $0x110] sm:$0xff] %v1611
      %1831 = vst [vmem:[%s148 + $0x118] sm:$0xff] %v1614
      %1832 = vst [vmem:[%s148 + $0x120] sm:$0xff] %v1619
      %1833 = vst [vmem:[%s148 + $0x128] sm:$0xff] %v1622
      %1834 = vst [vmem:[%s148 + $0x130] sm:$0xff] %v1627
      %1835 = vst [vmem:[%s148 + $0x138] sm:$0xff] %v1630
      %1836 = vst [vmem:[%s148 + $0x140] sm:$0xff] %v1635
      %1837 = vst [vmem:[%s148 + $0x148] sm:$0xff] %v1638
      %1838 = vst [vmem:[%s148 + $0x150] sm:$0xff] %v1643
      %1839 = vst [vmem:[%s148 + $0x158] sm:$0xff] %v1646
      %1840 = vst [vmem:[%s148 + $0x160] sm:$0xff] %v1651
      %1841 = vst [vmem:[%s148 + $0x168] sm:$0xff] %v1654
      %1842 = vst [vmem:[%s148 + $0x170] sm:$0xff] %v1659
      %1843 = vst [vmem:[%s148 + $0x178] sm:$0xff] %v1662
      %1844 = vst [vmem:[%s148 + $0x180] sm:$0xff] %v1667
      %1845 = vst [vmem:[%s148 + $0x188] sm:$0xff] %v1670
      %1846 = vst [vmem:[%s148 + $0x190] sm:$0xff] %v1675
      %1847 = vst [vmem:[%s148 + $0x198] sm:$0xff] %v1678
      %1848 = vst [vmem:[%s148 + $0x1a0] sm:$0xff] %v1683
      %1849 = vst [vmem:[%s148 + $0x1a8] sm:$0xff] %v1686
      %1850 = vst [vmem:[%s148 + $0x1b0] sm:$0xff] %v1691
      %1851 = vst [vmem:[%s148 + $0x1b8] sm:$0xff] %v1694
      %1852 = vst [vmem:[%s148 + $0x1c0] sm:$0xff] %v1699
      %1853 = vst [vmem:[%s148 + $0x1c8] sm:$0xff] %v1702
      %1854 = vst [vmem:[%s148 + $0x1d0] sm:$0xff] %v1707
      %1855 = vst [vmem:[%s148 + $0x1d8] sm:$0xff] %v1710
      %1856 = vst [vmem:[%s148 + $0x1e0] sm:$0xff] %v1715
      %1857 = vst [vmem:[%s148 + $0x1e8] sm:$0xff] %v1718
      %1858 = vst [vmem:[%s148 + $0x1f0] sm:$0xff] %v1723
      %1859 = vst [vmem:[%s148 + $0x1f8] sm:$0xff] %v1726
      %v1860 = vld [vmem:[#allocation3] sm:$0xff]
      %v1861 = vld [vmem:[#allocation3 + $0x8] sm:$0xff]
      %v1862 = vld [vmem:[#allocation3 + $0x10] sm:$0xff]
      %v1863 = vld [vmem:[#allocation3 + $0x18] sm:$0xff]
      %v1864 = vld [vmem:[#allocation3 + $0x20] sm:$0xff]
      %v1865 = vld [vmem:[#allocation3 + $0x28] sm:$0xff]
      %v1866 = vld [vmem:[#allocation3 + $0x30] sm:$0xff]
      %v1867 = vld [vmem:[#allocation3 + $0x38] sm:$0xff]
      %v1868 = vld [vmem:[#allocation3 + $0x40] sm:$0xff]
      %v1869 = vld [vmem:[#allocation3 + $0x48] sm:$0xff]
      %v1870 = vld [vmem:[#allocation3 + $0x50] sm:$0xff]
      %v1871 = vld [vmem:[#allocation3 + $0x58] sm:$0xff]
      %v1872 = vld [vmem:[#allocation3 + $0x60] sm:$0xff]
      %v1873 = vld [vmem:[#allocation3 + $0x68] sm:$0xff]
      %v1874 = vld [vmem:[#allocation3 + $0x70] sm:$0xff]
      %v1875 = vld [vmem:[#allocation3 + $0x78] sm:$0xff]
      %v1876 = vld [vmem:[#allocation3 + $0x80] sm:$0xff]
      %v1877 = vld [vmem:[#allocation3 + $0x88] sm:$0xff]
      %v1878 = vld [vmem:[#allocation3 + $0x90] sm:$0xff]
      %v1879 = vld [vmem:[#allocation3 + $0x98] sm:$0xff]
      %v1880 = vld [vmem:[#allocation3 + $0xa0] sm:$0xff]
      %v1881 = vld [vmem:[#allocation3 + $0xa8] sm:$0xff]
      %v1882 = vld [vmem:[#allocation3 + $0xb0] sm:$0xff]
      %v1883 = vld [vmem:[#allocation3 + $0xb8] sm:$0xff]
      %v1884 = vld [vmem:[#allocation3 + $0xc0] sm:$0xff]
      %v1885 = vld [vmem:[#allocation3 + $0xc8] sm:$0xff]
      %v1886 = vld [vmem:[#allocation3 + $0xd0] sm:$0xff]
      %v1887 = vld [vmem:[#allocation3 + $0xd8] sm:$0xff]
      %v1888 = vld [vmem:[#allocation3 + $0xe0] sm:$0xff]
      %v1889 = vld [vmem:[#allocation3 + $0xe8] sm:$0xff]
      %v1890 = vld [vmem:[#allocation3 + $0xf0] sm:$0xff]
      %v1891 = vld [vmem:[#allocation3 + $0xf8] sm:$0xff]
      %v1892 = vld [vmem:[#allocation3 + $0x100] sm:$0xff]
      %v1893 = vld [vmem:[#allocation3 + $0x108] sm:$0xff]
      %v1894 = vld [vmem:[#allocation3 + $0x110] sm:$0xff]
      %v1895 = vld [vmem:[#allocation3 + $0x118] sm:$0xff]
      %v1896 = vld [vmem:[#allocation3 + $0x120] sm:$0xff]
      %v1897 = vld [vmem:[#allocation3 + $0x128] sm:$0xff]
      %v1898 = vld [vmem:[#allocation3 + $0x130] sm:$0xff]
      %v1899 = vld [vmem:[#allocation3 + $0x138] sm:$0xff]
      %v1900 = vld [vmem:[#allocation3 + $0x140] sm:$0xff]
      %v1901 = vld [vmem:[#allocation3 + $0x148] sm:$0xff]
      %v1902 = vld [vmem:[#allocation3 + $0x150] sm:$0xff]
      %v1903 = vld [vmem:[#allocation3 + $0x158] sm:$0xff]
      %v1904 = vld [vmem:[#allocation3 + $0x160] sm:$0xff]
      %v1905 = vld [vmem:[#allocation3 + $0x168] sm:$0xff]
      %v1906 = vld [vmem:[#allocation3 + $0x170] sm:$0xff]
      %v1907 = vld [vmem:[#allocation3 + $0x178] sm:$0xff]
      %v1908 = vld [vmem:[#allocation3 + $0x180] sm:$0xff]
      %v1909 = vld [vmem:[#allocation3 + $0x188] sm:$0xff]
      %v1910 = vld [vmem:[#allocation3 + $0x190] sm:$0xff]
      %v1911 = vld [vmem:[#allocation3 + $0x198] sm:$0xff]
      %v1912 = vld [vmem:[#allocation3 + $0x1a0] sm:$0xff]
      %v1913 = vld [vmem:[#allocation3 + $0x1a8] sm:$0xff]
      %v1914 = vld [vmem:[#allocation3 + $0x1b0] sm:$0xff]
      %v1915 = vld [vmem:[#allocation3 + $0x1b8] sm:$0xff]
      %v1916 = vld [vmem:[#allocation3 + $0x1c0] sm:$0xff]
      %v1917 = vld [vmem:[#allocation3 + $0x1c8] sm:$0xff]
      %v1918 = vld [vmem:[#allocation3 + $0x1d0] sm:$0xff]
      %v1919 = vld [vmem:[#allocation3 + $0x1d8] sm:$0xff]
      %v1920 = vld [vmem:[#allocation3 + $0x1e0] sm:$0xff]
      %v1921 = vld [vmem:[#allocation3 + $0x1e8] sm:$0xff]
      %v1922 = vld [vmem:[#allocation3 + $0x1f0] sm:$0xff]
      %v1923 = vld [vmem:[#allocation3 + $0x1f8] sm:$0xff]
      %v1924 = vadd.f32 %v1860, %v1475
      %v1925 = vadd.f32 %v1861, %v1478
      %v1926 = vadd.f32 %v1862, %v1483
      %v1927 = vadd.f32 %v1863, %v1486
      %v1928 = vadd.f32 %v1864, %v1491
      %v1929 = vadd.f32 %v1865, %v1494
      %v1930 = vadd.f32 %v1866, %v1499
      %v1931 = vadd.f32 %v1867, %v1502
      %v1932 = vadd.f32 %v1868, %v1507
      %v1933 = vadd.f32 %v1869, %v1510
      %v1934 = vadd.f32 %v1870, %v1515
      %v1935 = vadd.f32 %v1871, %v1518
      %v1936 = vadd.f32 %v1872, %v1523
      %v1937 = vadd.f32 %v1873, %v1526
      %v1938 = vadd.f32 %v1874, %v1531
      %v1939 = vadd.f32 %v1875, %v1534
      %v1940 = vadd.f32 %v1876, %v1539
      %v1941 = vadd.f32 %v1877, %v1542
      %v1942 = vadd.f32 %v1878, %v1547
      %v1943 = vadd.f32 %v1879, %v1550
      %v1944 = vadd.f32 %v1880, %v1555
      %v1945 = vadd.f32 %v1881, %v1558
      %v1946 = vadd.f32 %v1882, %v1563
      %v1947 = vadd.f32 %v1883, %v1566
      %v1948 = vadd.f32 %v1884, %v1571
      %v1949 = vadd.f32 %v1885, %v1574
      %v1950 = vadd.f32 %v1886, %v1579
      %v1951 = vadd.f32 %v1887, %v1582
      %v1952 = vadd.f32 %v1888, %v1587
      %v1953 = vadd.f32 %v1889, %v1590
      %v1954 = vadd.f32 %v1890, %v1595
      %v1955 = vadd.f32 %v1891, %v1598
      %v1956 = vadd.f32 %v1892, %v1603
      %v1957 = vadd.f32 %v1893, %v1606
      %v1958 = vadd.f32 %v1894, %v1611
      %v1959 = vadd.f32 %v1895, %v1614
      %v1960 = vadd.f32 %v1896, %v1619
      %v1961 = vadd.f32 %v1897, %v1622
      %v1962 = vadd.f32 %v1898, %v1627
      %v1963 = vadd.f32 %v1899, %v1630
      %v1964 = vadd.f32 %v1900, %v1635
      %v1965 = vadd.f32 %v1901, %v1638
      %v1966 = vadd.f32 %v1902, %v1643
      %v1967 = vadd.f32 %v1903, %v1646
      %v1968 = vadd.f32 %v1904, %v1651
      %v1969 = vadd.f32 %v1905, %v1654
      %v1970 = vadd.f32 %v1906, %v1659
      %v1971 = vadd.f32 %v1907, %v1662
      %v1972 = vadd.f32 %v1908, %v1667
      %v1973 = vadd.f32 %v1909, %v1670
      %v1974 = vadd.f32 %v1910, %v1675
      %v1975 = vadd.f32 %v1911, %v1678
      %v1976 = vadd.f32 %v1912, %v1683
      %v1977 = vadd.f32 %v1913, %v1686
      %v1978 = vadd.f32 %v1914, %v1691
      %v1979 = vadd.f32 %v1915, %v1694
      %v1980 = vadd.f32 %v1916, %v1699
      %v1981 = vadd.f32 %v1917, %v1702
      %v1982 = vadd.f32 %v1918, %v1707
      %v1983 = vadd.f32 %v1919, %v1710
      %v1984 = vadd.f32 %v1920, %v1715
      %v1985 = vadd.f32 %v1921, %v1718
      %v1986 = vadd.f32 %v1922, %v1723
      %v1987 = vadd.f32 %v1923, %v1726
      %1988 = vst [vmem:[#allocation3] sm:$0xff] %v1924
      %1989 = vst [vmem:[#allocation3 + $0x8] sm:$0xff] %v1925
      %1990 = vst [vmem:[#allocation3 + $0x10] sm:$0xff] %v1926
      %1991 = vst [vmem:[#allocation3 + $0x18] sm:$0xff] %v1927
      %1992 = vst [vmem:[#allocation3 + $0x20] sm:$0xff] %v1928
      %1993 = vst [vmem:[#allocation3 + $0x28] sm:$0xff] %v1929
      %1994 = vst [vmem:[#allocation3 + $0x30] sm:$0xff] %v1930
      %1995 = vst [vmem:[#allocation3 + $0x38] sm:$0xff] %v1931
      %1996 = vst [vmem:[#allocation3 + $0x40] sm:$0xff] %v1932
      %1997 = vst [vmem:[#allocation3 + $0x48] sm:$0xff] %v1933
      %1998 = vst [vmem:[#allocation3 + $0x50] sm:$0xff] %v1934
      %1999 = vst [vmem:[#allocation3 + $0x58] sm:$0xff] %v1935
      %2000 = vst [vmem:[#allocation3 + $0x60] sm:$0xff] %v1936
      %2001 = vst [vmem:[#allocation3 + $0x68] sm:$0xff] %v1937
      %2002 = vst [vmem:[#allocation3 + $0x70] sm:$0xff] %v1938
      %2003 = vst [vmem:[#allocation3 + $0x78] sm:$0xff] %v1939
      %2004 = vst [vmem:[#allocation3 + $0x80] sm:$0xff] %v1940
      %2005 = vst [vmem:[#allocation3 + $0x88] sm:$0xff] %v1941
      %2006 = vst [vmem:[#allocation3 + $0x90] sm:$0xff] %v1942
      %2007 = vst [vmem:[#allocation3 + $0x98] sm:$0xff] %v1943
      %2008 = vst [vmem:[#allocation3 + $0xa0] sm:$0xff] %v1944
      %2009 = vst [vmem:[#allocation3 + $0xa8] sm:$0xff] %v1945
      %2010 = vst [vmem:[#allocation3 + $0xb0] sm:$0xff] %v1946
      %2011 = vst [vmem:[#allocation3 + $0xb8] sm:$0xff] %v1947
      %2012 = vst [vmem:[#allocation3 + $0xc0] sm:$0xff] %v1948
      %2013 = vst [vmem:[#allocation3 + $0xc8] sm:$0xff] %v1949
      %2014 = vst [vmem:[#allocation3 + $0xd0] sm:$0xff] %v1950
      %2015 = vst [vmem:[#allocation3 + $0xd8] sm:$0xff] %v1951
      %2016 = vst [vmem:[#allocation3 + $0xe0] sm:$0xff] %v1952
      %2017 = vst [vmem:[#allocation3 + $0xe8] sm:$0xff] %v1953
      %2018 = vst [vmem:[#allocation3 + $0xf0] sm:$0xff] %v1954
      %2019 = vst [vmem:[#allocation3 + $0xf8] sm:$0xff] %v1955
      %2020 = vst [vmem:[#allocation3 + $0x100] sm:$0xff] %v1956
      %2021 = vst [vmem:[#allocation3 + $0x108] sm:$0xff] %v1957
      %2022 = vst [vmem:[#allocation3 + $0x110] sm:$0xff] %v1958
      %2023 = vst [vmem:[#allocation3 + $0x118] sm:$0xff] %v1959
      %2024 = vst [vmem:[#allocation3 + $0x120] sm:$0xff] %v1960
      %2025 = vst [vmem:[#allocation3 + $0x128] sm:$0xff] %v1961
      %2026 = vst [vmem:[#allocation3 + $0x130] sm:$0xff] %v1962
      %2027 = vst [vmem:[#allocation3 + $0x138] sm:$0xff] %v1963
      %2028 = vst [vmem:[#allocation3 + $0x140] sm:$0xff] %v1964
      %2029 = vst [vmem:[#allocation3 + $0x148] sm:$0xff] %v1965
      %2030 = vst [vmem:[#allocation3 + $0x150] sm:$0xff] %v1966
      %2031 = vst [vmem:[#allocation3 + $0x158] sm:$0xff] %v1967
      %2032 = vst [vmem:[#allocation3 + $0x160] sm:$0xff] %v1968
      %2033 = vst [vmem:[#allocation3 + $0x168] sm:$0xff] %v1969
      %2034 = vst [vmem:[#allocation3 + $0x170] sm:$0xff] %v1970
      %2035 = vst [vmem:[#allocation3 + $0x178] sm:$0xff] %v1971
      %2036 = vst [vmem:[#allocation3 + $0x180] sm:$0xff] %v1972
      %2037 = vst [vmem:[#allocation3 + $0x188] sm:$0xff] %v1973
      %2038 = vst [vmem:[#allocation3 + $0x190] sm:$0xff] %v1974
      %2039 = vst [vmem:[#allocation3 + $0x198] sm:$0xff] %v1975
      %2040 = vst [vmem:[#allocation3 + $0x1a0] sm:$0xff] %v1976
      %2041 = vst [vmem:[#allocation3 + $0x1a8] sm:$0xff] %v1977
      %2042 = vst [vmem:[#allocation3 + $0x1b0] sm:$0xff] %v1978
      %2043 = vst [vmem:[#allocation3 + $0x1b8] sm:$0xff] %v1979
      %2044 = vst [vmem:[#allocation3 + $0x1c0] sm:$0xff] %v1980
      %2045 = vst [vmem:[#allocation3 + $0x1c8] sm:$0xff] %v1981
      %2046 = vst [vmem:[#allocation3 + $0x1d0] sm:$0xff] %v1982
      %2047 = vst [vmem:[#allocation3 + $0x1d8] sm:$0xff] %v1983
      %2048 = vst [vmem:[#allocation3 + $0x1e0] sm:$0xff] %v1984
      %2049 = vst [vmem:[#allocation3 + $0x1e8] sm:$0xff] %v1985
      %2050 = vst [vmem:[#allocation3 + $0x1f0] sm:$0xff] %v1986
      %2051 = vst [vmem:[#allocation3 + $0x1f8] sm:$0xff] %v1987
      %p2052 = scmp.eq.s32.totalorder %s15, 2
      // Predicated region
      $region33: #{lgcn_forward.1} parent=27 // pred_check
        %p2053 = pneg %p2052
      $region34: #{lgcn_forward.1} parent=27 // pred_check_branch
        %2055 = sbr.rel (%p2053) target = $region36
      $region35: #{lgcn_forward.1} parent=27 // pred_region
        %v2056 = vld [vmem:[#allocation3] sm:$0xff]
        %v2057 = vld [vmem:[#allocation3 + $0x8] sm:$0xff]
        %v2058 = vld [vmem:[#allocation3 + $0x10] sm:$0xff]
        %v2059 = vld [vmem:[#allocation3 + $0x18] sm:$0xff]
        %v2060 = vld [vmem:[#allocation3 + $0x20] sm:$0xff]
        %v2061 = vld [vmem:[#allocation3 + $0x28] sm:$0xff]
        %v2062 = vld [vmem:[#allocation3 + $0x30] sm:$0xff]
        %v2063 = vld [vmem:[#allocation3 + $0x38] sm:$0xff]
        %v2064 = vld [vmem:[#allocation3 + $0x40] sm:$0xff]
        %v2065 = vld [vmem:[#allocation3 + $0x48] sm:$0xff]
        %v2066 = vld [vmem:[#allocation3 + $0x50] sm:$0xff]
        %v2067 = vld [vmem:[#allocation3 + $0x58] sm:$0xff]
        %v2068 = vld [vmem:[#allocation3 + $0x60] sm:$0xff]
        %v2069 = vld [vmem:[#allocation3 + $0x68] sm:$0xff]
        %v2070 = vld [vmem:[#allocation3 + $0x70] sm:$0xff]
        %v2071 = vld [vmem:[#allocation3 + $0x78] sm:$0xff]
        %v2072 = vld [vmem:[#allocation3 + $0x80] sm:$0xff]
        %v2073 = vld [vmem:[#allocation3 + $0x88] sm:$0xff]
        %v2074 = vld [vmem:[#allocation3 + $0x90] sm:$0xff]
        %v2075 = vld [vmem:[#allocation3 + $0x98] sm:$0xff]
        %v2076 = vld [vmem:[#allocation3 + $0xa0] sm:$0xff]
        %v2077 = vld [vmem:[#allocation3 + $0xa8] sm:$0xff]
        %v2078 = vld [vmem:[#allocation3 + $0xb0] sm:$0xff]
        %v2079 = vld [vmem:[#allocation3 + $0xb8] sm:$0xff]
        %v2080 = vld [vmem:[#allocation3 + $0xc0] sm:$0xff]
        %v2081 = vld [vmem:[#allocation3 + $0xc8] sm:$0xff]
        %v2082 = vld [vmem:[#allocation3 + $0xd0] sm:$0xff]
        %v2083 = vld [vmem:[#allocation3 + $0xd8] sm:$0xff]
        %v2084 = vld [vmem:[#allocation3 + $0xe0] sm:$0xff]
        %v2085 = vld [vmem:[#allocation3 + $0xe8] sm:$0xff]
        %v2086 = vld [vmem:[#allocation3 + $0xf0] sm:$0xff]
        %v2087 = vld [vmem:[#allocation3 + $0xf8] sm:$0xff]
        %v2088 = vld [vmem:[#allocation3 + $0x100] sm:$0xff]
        %v2089 = vld [vmem:[#allocation3 + $0x108] sm:$0xff]
        %v2090 = vld [vmem:[#allocation3 + $0x110] sm:$0xff]
        %v2091 = vld [vmem:[#allocation3 + $0x118] sm:$0xff]
        %v2092 = vld [vmem:[#allocation3 + $0x120] sm:$0xff]
        %v2093 = vld [vmem:[#allocation3 + $0x128] sm:$0xff]
        %v2094 = vld [vmem:[#allocation3 + $0x130] sm:$0xff]
        %v2095 = vld [vmem:[#allocation3 + $0x138] sm:$0xff]
        %v2096 = vld [vmem:[#allocation3 + $0x140] sm:$0xff]
        %v2097 = vld [vmem:[#allocation3 + $0x148] sm:$0xff]
        %v2098 = vld [vmem:[#allocation3 + $0x150] sm:$0xff]
        %v2099 = vld [vmem:[#allocation3 + $0x158] sm:$0xff]
        %v2100 = vld [vmem:[#allocation3 + $0x160] sm:$0xff]
        %v2101 = vld [vmem:[#allocation3 + $0x168] sm:$0xff]
        %v2102 = vld [vmem:[#allocation3 + $0x170] sm:$0xff]
        %v2103 = vld [vmem:[#allocation3 + $0x178] sm:$0xff]
        %v2104 = vld [vmem:[#allocation3 + $0x180] sm:$0xff]
        %v2105 = vld [vmem:[#allocation3 + $0x188] sm:$0xff]
        %v2106 = vld [vmem:[#allocation3 + $0x190] sm:$0xff]
        %v2107 = vld [vmem:[#allocation3 + $0x198] sm:$0xff]
        %v2108 = vld [vmem:[#allocation3 + $0x1a0] sm:$0xff]
        %v2109 = vld [vmem:[#allocation3 + $0x1a8] sm:$0xff]
        %v2110 = vld [vmem:[#allocation3 + $0x1b0] sm:$0xff]
        %v2111 = vld [vmem:[#allocation3 + $0x1b8] sm:$0xff]
        %v2112 = vld [vmem:[#allocation3 + $0x1c0] sm:$0xff]
        %v2113 = vld [vmem:[#allocation3 + $0x1c8] sm:$0xff]
        %v2114 = vld [vmem:[#allocation3 + $0x1d0] sm:$0xff]
        %v2115 = vld [vmem:[#allocation3 + $0x1d8] sm:$0xff]
        %v2116 = vld [vmem:[#allocation3 + $0x1e0] sm:$0xff]
        %v2117 = vld [vmem:[#allocation3 + $0x1e8] sm:$0xff]
        %v2118 = vld [vmem:[#allocation3 + $0x1f0] sm:$0xff]
        %v2119 = vld [vmem:[#allocation3 + $0x1f8] sm:$0xff]
        %v2120 = vmul.f32 %v2056, 0.25
        %v2121 = vmul.f32 %v2057, 0.25
        %v2122 = vmul.f32 %v2058, 0.25
        %v2123 = vmul.f32 %v2059, 0.25
        %v2124 = vmul.f32 %v2060, 0.25
        %v2125 = vmul.f32 %v2061, 0.25
        %v2126 = vmul.f32 %v2062, 0.25
        %v2127 = vmul.f32 %v2063, 0.25
        %v2128 = vmul.f32 %v2064, 0.25
        %v2129 = vmul.f32 %v2065, 0.25
        %v2130 = vmul.f32 %v2066, 0.25
        %v2131 = vmul.f32 %v2067, 0.25
        %v2132 = vmul.f32 %v2068, 0.25
        %v2133 = vmul.f32 %v2069, 0.25
        %v2134 = vmul.f32 %v2070, 0.25
        %v2135 = vmul.f32 %v2071, 0.25
        %v2136 = vmul.f32 %v2072, 0.25
        %v2137 = vmul.f32 %v2073, 0.25
        %v2138 = vmul.f32 %v2074, 0.25
        %v2139 = vmul.f32 %v2075, 0.25
        %v2140 = vmul.f32 %v2076, 0.25
        %v2141 = vmul.f32 %v2077, 0.25
        %v2142 = vmul.f32 %v2078, 0.25
        %v2143 = vmul.f32 %v2079, 0.25
        %v2144 = vmul.f32 %v2080, 0.25
        %v2145 = vmul.f32 %v2081, 0.25
        %v2146 = vmul.f32 %v2082, 0.25
        %v2147 = vmul.f32 %v2083, 0.25
        %v2148 = vmul.f32 %v2084, 0.25
        %v2149 = vmul.f32 %v2085, 0.25
        %v2150 = vmul.f32 %v2086, 0.25
        %v2151 = vmul.f32 %v2087, 0.25
        %v2152 = vmul.f32 %v2088, 0.25
        %v2153 = vmul.f32 %v2089, 0.25
        %v2154 = vmul.f32 %v2090, 0.25
        %v2155 = vmul.f32 %v2091, 0.25
        %v2156 = vmul.f32 %v2092, 0.25
        %v2157 = vmul.f32 %v2093, 0.25
        %v2158 = vmul.f32 %v2094, 0.25
        %v2159 = vmul.f32 %v2095, 0.25
        %v2160 = vmul.f32 %v2096, 0.25
        %v2161 = vmul.f32 %v2097, 0.25
        %v2162 = vmul.f32 %v2098, 0.25
        %v2163 = vmul.f32 %v2099, 0.25
        %v2164 = vmul.f32 %v2100, 0.25
        %v2165 = vmul.f32 %v2101, 0.25
        %v2166 = vmul.f32 %v2102, 0.25
        %v2167 = vmul.f32 %v2103, 0.25
        %v2168 = vmul.f32 %v2104, 0.25
        %v2169 = vmul.f32 %v2105, 0.25
        %v2170 = vmul.f32 %v2106, 0.25
        %v2171 = vmul.f32 %v2107, 0.25
        %v2172 = vmul.f32 %v2108, 0.25
        %v2173 = vmul.f32 %v2109, 0.25
        %v2174 = vmul.f32 %v2110, 0.25
        %v2175 = vmul.f32 %v2111, 0.25
        %v2176 = vmul.f32 %v2112, 0.25
        %v2177 = vmul.f32 %v2113, 0.25
        %v2178 = vmul.f32 %v2114, 0.25
        %v2179 = vmul.f32 %v2115, 0.25
        %v2180 = vmul.f32 %v2116, 0.25
        %v2181 = vmul.f32 %v2117, 0.25
        %v2182 = vmul.f32 %v2118, 0.25
        %v2183 = vmul.f32 %v2119, 0.25
        %2184 = vst [vmem:[%s3] sm:$0xff] %v2120
        %2185 = vst [vmem:[%s3 + $0x8] sm:$0xff] %v2121
        %2186 = vst [vmem:[%s3 + $0x10] sm:$0xff] %v2122
        %2187 = vst [vmem:[%s3 + $0x18] sm:$0xff] %v2123
        %2188 = vst [vmem:[%s3 + $0x20] sm:$0xff] %v2124
        %2189 = vst [vmem:[%s3 + $0x28] sm:$0xff] %v2125
        %2190 = vst [vmem:[%s3 + $0x30] sm:$0xff] %v2126
        %2191 = vst [vmem:[%s3 + $0x38] sm:$0xff] %v2127
        %2192 = vst [vmem:[%s3 + $0x40] sm:$0xff] %v2128
        %2193 = vst [vmem:[%s3 + $0x48] sm:$0xff] %v2129
        %2194 = vst [vmem:[%s3 + $0x50] sm:$0xff] %v2130
        %2195 = vst [vmem:[%s3 + $0x58] sm:$0xff] %v2131
        %2196 = vst [vmem:[%s3 + $0x60] sm:$0xff] %v2132
        %2197 = vst [vmem:[%s3 + $0x68] sm:$0xff] %v2133
        %2198 = vst [vmem:[%s3 + $0x70] sm:$0xff] %v2134
        %2199 = vst [vmem:[%s3 + $0x78] sm:$0xff] %v2135
        %2200 = vst [vmem:[%s3 + $0x80] sm:$0xff] %v2136
        %2201 = vst [vmem:[%s3 + $0x88] sm:$0xff] %v2137
        %2202 = vst [vmem:[%s3 + $0x90] sm:$0xff] %v2138
        %2203 = vst [vmem:[%s3 + $0x98] sm:$0xff] %v2139
        %2204 = vst [vmem:[%s3 + $0xa0] sm:$0xff] %v2140
        %2205 = vst [vmem:[%s3 + $0xa8] sm:$0xff] %v2141
        %2206 = vst [vmem:[%s3 + $0xb0] sm:$0xff] %v2142
        %2207 = vst [vmem:[%s3 + $0xb8] sm:$0xff] %v2143
        %2208 = vst [vmem:[%s3 + $0xc0] sm:$0xff] %v2144
        %2209 = vst [vmem:[%s3 + $0xc8] sm:$0xff] %v2145
        %2210 = vst [vmem:[%s3 + $0xd0] sm:$0xff] %v2146
        %2211 = vst [vmem:[%s3 + $0xd8] sm:$0xff] %v2147
        %2212 = vst [vmem:[%s3 + $0xe0] sm:$0xff] %v2148
        %2213 = vst [vmem:[%s3 + $0xe8] sm:$0xff] %v2149
        %2214 = vst [vmem:[%s3 + $0xf0] sm:$0xff] %v2150
        %2215 = vst [vmem:[%s3 + $0xf8] sm:$0xff] %v2151
        %2216 = vst [vmem:[%s3 + $0x100] sm:$0xff] %v2152
        %2217 = vst [vmem:[%s3 + $0x108] sm:$0xff] %v2153
        %2218 = vst [vmem:[%s3 + $0x110] sm:$0xff] %v2154
        %2219 = vst [vmem:[%s3 + $0x118] sm:$0xff] %v2155
        %2220 = vst [vmem:[%s3 + $0x120] sm:$0xff] %v2156
        %2221 = vst [vmem:[%s3 + $0x128] sm:$0xff] %v2157
        %2222 = vst [vmem:[%s3 + $0x130] sm:$0xff] %v2158
        %2223 = vst [vmem:[%s3 + $0x138] sm:$0xff] %v2159
        %2224 = vst [vmem:[%s3 + $0x140] sm:$0xff] %v2160
        %2225 = vst [vmem:[%s3 + $0x148] sm:$0xff] %v2161
        %2226 = vst [vmem:[%s3 + $0x150] sm:$0xff] %v2162
        %2227 = vst [vmem:[%s3 + $0x158] sm:$0xff] %v2163
        %2228 = vst [vmem:[%s3 + $0x160] sm:$0xff] %v2164
        %2229 = vst [vmem:[%s3 + $0x168] sm:$0xff] %v2165
        %2230 = vst [vmem:[%s3 + $0x170] sm:$0xff] %v2166
        %2231 = vst [vmem:[%s3 + $0x178] sm:$0xff] %v2167
        %2232 = vst [vmem:[%s3 + $0x180] sm:$0xff] %v2168
        %2233 = vst [vmem:[%s3 + $0x188] sm:$0xff] %v2169
        %2234 = vst [vmem:[%s3 + $0x190] sm:$0xff] %v2170
        %2235 = vst [vmem:[%s3 + $0x198] sm:$0xff] %v2171
        %2236 = vst [vmem:[%s3 + $0x1a0] sm:$0xff] %v2172
        %2237 = vst [vmem:[%s3 + $0x1a8] sm:$0xff] %v2173
        %2238 = vst [vmem:[%s3 + $0x1b0] sm:$0xff] %v2174
        %2239 = vst [vmem:[%s3 + $0x1b8] sm:$0xff] %v2175
        %2240 = vst [vmem:[%s3 + $0x1c0] sm:$0xff] %v2176
        %2241 = vst [vmem:[%s3 + $0x1c8] sm:$0xff] %v2177
        %2242 = vst [vmem:[%s3 + $0x1d0] sm:$0xff] %v2178
        %2243 = vst [vmem:[%s3 + $0x1d8] sm:$0xff] %v2179
        %2244 = vst [vmem:[%s3 + $0x1e0] sm:$0xff] %v2180
        %2245 = vst [vmem:[%s3 + $0x1e8] sm:$0xff] %v2181
        %2246 = vst [vmem:[%s3 + $0x1f0] sm:$0xff] %v2182
        %2247 = vst [vmem:[%s3 + $0x1f8] sm:$0xff] %v2183
      $region36: #{lgcn_forward.1} parent=27 // pred_fallthru
        _
      %p2248 = scmp.lt.s32.totalorder %s15, 2
      %s2249 = scalar_select %p2248, %s15, 2
      %s2250 = smul.addr %s2249, 64
      %s2251 = smul.addr %s2250, 8
      %s2252 = scalar_lea.vmem %s2, %s2251
      // Predicated region
      $region37: #{lgcn_forward.1} parent=27 // pred_check
        %p2253 = pneg %p75
      $region38: #{lgcn_forward.1} parent=27 // pred_check_branch
        %2255 = sbr.rel (%p2253) target = $region40
      $region39: #{lgcn_forward.1} parent=27 // pred_region
        _
      $region40: #{lgcn_forward.1} parent=27 // pred_fallthru
        _
      // Predicated region
      $region41: #{lgcn_forward.1} parent=27 // pred_check
        %p2256 = pneg %p96
      $region42: #{lgcn_forward.1} parent=27 // pred_check_branch
        %2258 = sbr.rel (%p2256) target = $region44
      $region43: #{lgcn_forward.1} parent=27 // pred_region
        _
      $region44: #{lgcn_forward.1} parent=27 // pred_fallthru
        _
      // Predicated region
      $region45: #{lgcn_forward.1} parent=27 // pred_check
        %p2259 = pneg %p96
      $region46: #{lgcn_forward.1} parent=27 // pred_check_branch
        %2261 = sbr.rel (%p2259) target = $region48
      $region47: #{lgcn_forward.1} parent=27 // pred_region
        _
      $region48: #{lgcn_forward.1} parent=27 // pred_fallthru
        _
    $region28: #{lgcn_forward.1} parent=5 // pred_fallthru
      _
    %p2262 = scmp.le.s32.totalorder 2, %s10
    // Predicated region
    $region49: #{lgcn_forward.1} parent=5 // pred_check
      %p2263 = pneg %p2262
    $region50: #{lgcn_forward.1} parent=5 // pred_check_branch
      %2265 = sbr.rel (%p2263) target = $region52
    $region51: #{lgcn_forward.1} parent=5 // pred_region
      %s2266 = ssub.s32 %s10, 2
      // Predicated region
      $region53: #{lgcn_forward.1} parent=51 // pred_check
        %p2267 = pneg %p81
      $region54: #{lgcn_forward.1} parent=51 // pred_check_branch
        %2269 = sbr.rel (%p2267) target = $region56
      $region55: #{lgcn_forward.1} parent=51 // pred_region
        %p2270 = scmp.lt.s32.totalorder %s16, 2
        %s2271 = scalar_select %p2270, %s16, 2
        %s2272 = smul.addr %s2271, 64
        %s2273 = smul.addr %s2272, 8
        %s2274 = scalar_lea.vmem %s2, %s2273
      $region56: #{lgcn_forward.1} parent=51 // pred_fallthru
        _
    $region52: #{lgcn_forward.1} parent=5 // pred_fallthru
      _
  $region6: #{lgcn_forward.1} parent=0 // loop_footer
    %s14 = sadd.s32 1, %s10
  $region7: #{lgcn_forward.1} parent=0 // loop_footer_branch
    %9 = sbr.rel target = $region3
  $region8: #{lgcn_forward.1} parent=0 // loop_exit
    _

</llo_original>
